<compile_context>
chip_gen: v7x
topology: tpu7x:2x2x1
jax: 0.10.0
libtpu: 0.0.40
codegen_flags: <defaults>
</compile_context>

<pallas_src>
import jax
import jax.numpy as jnp
from jax.experimental import pallas as pl
from jax.experimental.pallas import tpu as pltpu


def _round_up(x, m):
    return (x + m - 1) // m * m


def _make_kernel(filter_sizes, num_filters, use_context, L_w, L_proc, max_window):
    n_win = len(filter_sizes)
    C = 3 if use_context else 2

    def kernel(*refs):
        idx = 0
        word_ref = refs[idx]; idx += 1          # (TILE_N, L_pad, E_w) bf16
        ent_ref = refs[idx]; idx += 1           # (TILE_N, L_pad, E_e) bf16
        ctx_ref = None
        if use_context:
            ctx_ref = refs[idx]; idx += 1       # (TILE_N, L_pad, E_e) bf16
        wt_ref = refs[idx]; idx += 1            # (E_e, E_w) bf16 (Linear weight, transposed)
        bt_ref = refs[idx]; idx += 1            # (1, E_w) f32
        conv_w_refs = refs[idx:idx + n_win]; idx += n_win   # each (C*window*E_w, F) bf16
        conv_b_refs = refs[idx:idx + n_win]; idx += n_win   # each (1, F) f32
        out_ref = refs[idx]                     # (TILE_N, n_win * F) f32

        tile_n, L_pad, E_w = word_ref.shape
        E_e = ent_ref.shape[-1]

        wt = wt_ref[...]
        bt = bt_ref[...]

        def transform(ref):
            # tanh(entity_transform(x)) on the first L_proc rows of every item,
            # then zero guard rows so window shifts stay in-bounds.
            x = ref[:, :L_proc, :]                                  # (TILE_N, L_proc, E_e)
            x2 = x.reshape(tile_n * L_proc, E_e)
            t = jnp.tanh(jnp.dot(x2, wt, preferred_element_type=jnp.float32) + bt)
            t = t.astype(jnp.bfloat16).reshape(tile_n, L_proc, E_w)
            if max_window > 1:
                pad = jnp.zeros((tile_n, max_window - 1, E_w), jnp.bfloat16)
                t = jnp.concatenate([t, pad], axis=1)               # (TILE_N, L_pad, E_w)
            return t

        # Channel order matches the PyTorch stack: [word, tanh(T(entity)), tanh(T(context))].
        channels = [word_ref[...], transform(ent_ref)]
        if use_context:
            channels.append(transform(ctx_ref))

        pooled = []
        for wi, window in enumerate(filter_sizes):
            L_out = L_w - window + 1
            K = C * window * E_w
            # im2col slab: concat shifted channel slices along the lane axis.
            pieces = []
            for ch in channels:
                for t in range(window):
                    pieces.append(ch[:, t:t + L_proc, :])           # (TILE_N, L_proc, E_w)
            slab = jnp.concatenate(pieces, axis=2)                  # (TILE_N, L_proc, K)
            slab2 = slab.reshape(tile_n * L_proc, K)
            acc = jnp.dot(slab2, conv_w_refs[wi][...],
                          preferred_element_type=jnp.float32)       # (TILE_N*L_proc, F)
            acc = acc + conv_b_refs[wi][...]
            act = jnp.maximum(acc, 0.0).reshape(tile_n, L_proc, num_filters)
            # Mask positions past the valid convolution length, then max-pool.
            l_idx = jax.lax.broadcasted_iota(jnp.int32,
                                             (tile_n, L_proc, num_filters), 1)
            act = jnp.where(l_idx < L_out, act, 0.0)
            pooled.append(jnp.max(act, axis=1))                     # (TILE_N, F)

        # One dense (TILE_N, total_F) store per grid step.
        out_ref[...] = jnp.concatenate(pooled, axis=1)

    return kernel


def kcnn_forward(params, news_indexs, news_entity_indexs, model_config, tile_n=256):
    filter_sizes = tuple(model_config['filter_sizes'])
    num_filters = model_config['num_filters']
    use_context = model_config['use_context']
    C = 3 if use_context else 2
    n_win = len(filter_sizes)

    ifhistory = news_indexs.ndim == 3
    if ifhistory:
        N0, L_h, L_w_ = news_indexs.shape
        news_indexs = news_indexs.reshape(N0 * L_h, L_w_)
        news_entity_indexs = news_entity_indexs.reshape(N0 * L_h, L_w_)

    # Embedding lookups (plain-JAX gather glue).
    # TODO(synk): fuse the gather into the kernel (scalar-prefetch indices +
    # VMEM-resident tables / manual row DMA) to drop the HBM round trip of the
    # gathered activations.
    word_vec = jnp.take(params['word_embedding'], news_indexs, axis=0)
    ent_vec = jnp.take(params['entity_embedding'], news_entity_indexs, axis=0)
    chans = [word_vec, ent_vec]
    if use_context:
        chans.append(jnp.take(params['context_embedding'], news_entity_indexs, axis=0))

    N, L_w, E_w = word_vec.shape
    E_e = ent_vec.shape[-1]
    max_window = max(filter_sizes)
    L_proc = _round_up(L_w, 8)                 # sublane-clean processed length
    L_pad = L_proc + max_window - 1            # guard rows for window shifts
    total_F = n_win * num_filters

    # TILE_N: multiple of 8, sized for VMEM (for larger L_w/E shrink or raise
    # vmem_limit_bytes); keep >=2 grid blocks on big batches for v7x's 2 TCs.
    TILE_N = min(_round_up(tile_n, 8), _round_up(N, 8))
    N_pad = _round_up(N, TILE_N)
    grid = (N_pad // TILE_N,)

    def prep(x):
        # bf16 halves the dominant activation DMA bytes; accumulation stays f32.
        return jnp.pad(x.astype(jnp.bfloat16),
                       ((0, N_pad - N), (0, L_pad - L_w), (0, 0)))

    inputs = [prep(c) for c in chans]

    wt = params['entity_transform_w'].T.astype(jnp.bfloat16)               # (E_e, E_w)
    bt = params['entity_transform_b'].reshape(1, E_w).astype(jnp.float32)  # (1, E_w)
    inputs += [wt, bt]

    conv_ws, conv_bs = [], []
    for window in filter_sizes:
        w = params['conv'][window]['w']                     # (F, C, window, E_w)
        K = C * window * E_w
        conv_ws.append(w.reshape(num_filters, K).T.astype(jnp.bfloat16))   # (K, F)
        conv_bs.append(params['conv'][window]['b'].reshape(1, num_filters)
                       .astype(jnp.float32))
    inputs += conv_ws + conv_bs

    in_specs = [pl.BlockSpec((TILE_N, L_pad, E_w), lambda i: (i, 0, 0)),
                pl.BlockSpec((TILE_N, L_pad, E_e), lambda i: (i, 0, 0))]
    if use_context:
        in_specs.append(pl.BlockSpec((TILE_N, L_pad, E_e), lambda i: (i, 0, 0)))
    in_specs += [pl.BlockSpec((E_e, E_w), lambda i: (0, 0)),
                 pl.BlockSpec((1, E_w), lambda i: (0, 0))]
    for window in filter_sizes:
        K = C * window * E_w
        in_specs.append(pl.BlockSpec((K, num_filters), lambda i: (0, 0)))
    for _ in filter_sizes:
        in_specs.append(pl.BlockSpec((1, num_filters), lambda i: (0, 0)))

    out_spec = pl.BlockSpec((TILE_N, total_F), lambda i: (i, 0))

    kernel = _make_kernel(filter_sizes, num_filters, use_context,
                          L_w, L_proc, max_window)

    out = pl.pallas_call(
        kernel,
        out_shape=jax.ShapeDtypeStruct((N_pad, total_F), jnp.float32),
        grid=grid,
        in_specs=in_specs,
        out_specs=out_spec,
        compiler_params=pltpu.CompilerParams(dimension_semantics=("parallel",)),
    )(*inputs)

    final = out[:N]
    if ifhistory:
        final = final.reshape(N0, L_h, total_F)
    return final


def kcnn_reference(params, news_indexs, news_entity_indexs, model_config):
    """Pure-JAX f32 reference mirroring the PyTorch forward."""
    filter_sizes = tuple(model_config['filter_sizes'])
    use_context = model_config['use_context']
    word = jnp.take(params['word_embedding'], news_indexs, axis=0)
    ent = jnp.take(params['entity_embedding'], news_entity_indexs, axis=0)
    te = jnp.tanh(ent @ params['entity_transform_w'].T + params['entity_transform_b'])
    chans = [word, te]
    if use_context:
        ctx = jnp.take(params['context_embedding'], news_entity_indexs, axis=0)
        tc = jnp.tanh(ctx @ params['entity_transform_w'].T + params['entity_transform_b'])
        chans.append(tc)
    x = jnp.stack(chans, axis=-3)                   # (N, C, L_w, E_w)
    L_w = x.shape[-2]
    outs = []
    for window in filter_sizes:
        w = params['conv'][window]['w']             # (F, C, window, E_w)
        b = params['conv'][window]['b']
        L_out = L_w - window + 1
        patches = jnp.stack([x[:, :, t:t + window, :] for t in range(L_out)], axis=2)
        conv = jnp.einsum('nctwe,fcwe->nft', patches, w) + b[None, :, None]
        act = jnp.maximum(conv, 0.0)
        outs.append(act.max(-1))
    return jnp.concatenate(outs, axis=-1)


def init_params(key, model_config):
    E_w = model_config['word_embedding_dim']
    E_e = model_config['entity_embedding_dim']
    F = model_config['num_filters']
    C = 3 if model_config['use_context'] else 2
    filter_sizes = tuple(model_config['filter_sizes'])
    keys = jax.random.split(key, 6 + 2 * len(filter_sizes))

    word_emb = 0.1 * jax.random.normal(keys[0], (model_config['word_size'], E_w), jnp.float32)
    word_emb = word_emb.at[0].set(0.0)              # padding_idx=0
    ent_emb = 0.1 * jax.random.normal(keys[1], (model_config['entity_size'], E_e), jnp.float32)
    ent_emb = ent_emb.at[0].set(0.0)
    ctx_emb = 0.1 * jax.random.normal(keys[2], (model_config['entity_size'], E_e), jnp.float32)
    ctx_emb = ctx_emb.at[0].set(0.0)

    params = {
        'word_embedding': word_emb,
        'entity_embedding': ent_emb,
        'context_embedding': ctx_emb,
        'entity_transform_w': 0.1 * jax.random.normal(keys[3], (E_w, E_e), jnp.float32),
        'entity_transform_b': 0.1 * jax.random.normal(keys[4], (E_w,), jnp.float32),
        'conv': {},
    }
    for i, window in enumerate(filter_sizes):
        kw = jax.random.split(keys[5 + i], 2)
        params['conv'][window] = {
            'w': 0.1 * jax.random.normal(kw[0], (F, C, window, E_w), jnp.float32),
            'b': 0.1 * jax.random.normal(kw[1], (F,), jnp.float32),
        }
    return params


if __name__ == "__main__":
    model_config = {
        'word_size': 100,
        'entity_size': 50,
        'word_embedding_dim': 32,
        'entity_embedding_dim': 16,
        'num_filters': 32,
        'filter_sizes': [2, 3],
        'use_context': True,
    }
    N, L_w = 2, 8

    key = jax.random.PRNGKey(0)
    k_params, k_words, k_ents = jax.random.split(key, 3)
    params = init_params(k_params, model_config)

    news_indexs = jax.random.randint(k_words, (N, L_w), 0, model_config['word_size'], jnp.int32)
    news_entity_indexs = jax.random.randint(k_ents, (N, L_w), 0, model_config['entity_size'], jnp.int32)

    out = kcnn_forward(params, news_indexs, news_entity_indexs, model_config)
    out = jax.block_until_ready(out)

    ref = kcnn_reference(params, news_indexs, news_entity_indexs, model_config)
    # bf16 MXU operands (f32 accumulation) -> ~1e-3-level deviation vs f32 reference.
    if not jnp.allclose(out, ref, atol=2e-2, rtol=2e-2):
        raise AssertionError("Pallas KCNN output does not match reference")

    print("KERNEL_OK")
</pallas_src>

<mosaic_0001>
module attributes {stable_mosaic.version = 11 : i64} {
  func.func @kernel(%arg0: i32, %arg1: memref<8x10x32xbf16, #tpu.memory_space<vmem>>, %arg2: memref<8x10x16xbf16, #tpu.memory_space<vmem>>, %arg3: memref<8x10x16xbf16, #tpu.memory_space<vmem>>, %arg4: memref<16x32xbf16, #tpu.memory_space<vmem>>, %arg5: memref<1x32xf32, #tpu.memory_space<vmem>>, %arg6: memref<192x32xbf16, #tpu.memory_space<vmem>>, %arg7: memref<288x32xbf16, #tpu.memory_space<vmem>>, %arg8: memref<1x32xf32, #tpu.memory_space<vmem>>, %arg9: memref<1x32xf32, #tpu.memory_space<vmem>>, %arg10: memref<8x64xf32, #tpu.memory_space<vmem>>) attributes {dimension_semantics = [#tpu.dimension_semantics<parallel>], iteration_bounds = array<i64: 1>, scalar_prefetch = 0 : i64, scratch_operands = 0 : i64, tpu.core_type = #tpu.core_type<tc>, window_params = [{transform_indices = @transform_0, window_bounds = array<i64: 8, 10, 32>}, {transform_indices = @transform_1, window_bounds = array<i64: 8, 10, 16>}, {transform_indices = @transform_2, window_bounds = array<i64: 8, 10, 16>}, {pipeline_mode = #tpu.pipeline_mode<synchronous>, transform_indices = @transform_3, window_bounds = array<i64: 16, 32>}, {pipeline_mode = #tpu.pipeline_mode<synchronous>, transform_indices = @transform_4, window_bounds = array<i64: 1, 32>}, {pipeline_mode = #tpu.pipeline_mode<synchronous>, transform_indices = @transform_5, window_bounds = array<i64: 192, 32>}, {pipeline_mode = #tpu.pipeline_mode<synchronous>, transform_indices = @transform_6, window_bounds = array<i64: 288, 32>}, {pipeline_mode = #tpu.pipeline_mode<synchronous>, transform_indices = @transform_7, window_bounds = array<i64: 1, 32>}, {pipeline_mode = #tpu.pipeline_mode<synchronous>, transform_indices = @transform_8, window_bounds = array<i64: 1, 32>}, {transform_indices = @transform_9, window_bounds = array<i64: 8, 64>}]} {
    %c0 = arith.constant 0 : index
    %c0_0 = arith.constant 0 : index
    %0 = vector.load %arg4[%c0, %c0_0] : memref<16x32xbf16, #tpu.memory_space<vmem>>, vector<16x32xbf16>
    %c0_1 = arith.constant 0 : index
    %c0_2 = arith.constant 0 : index
    %1 = vector.load %arg5[%c0_1, %c0_2] : memref<1x32xf32, #tpu.memory_space<vmem>>, vector<1x32xf32>
    %c0_3 = arith.constant 0 : index
    %c0_4 = arith.constant 0 : index
    %c0_5 = arith.constant 0 : index
    %2 = vector.load %arg1[%c0_3, %c0_4, %c0_5] : memref<8x10x32xbf16, #tpu.memory_space<vmem>>, vector<8x10x32xbf16>
    %c0_6 = arith.constant 0 : index
    %c0_7 = arith.constant 0 : index
    %c0_8 = arith.constant 0 : index
    %3 = vector.load %arg2[%c0_6, %c0_7, %c0_8] : memref<8x10x16xbf16, #tpu.memory_space<vmem>>, vector<8x8x16xbf16>
    %4 = vector.shape_cast %3 : vector<8x8x16xbf16> to vector<64x16xbf16>
    %cst = arith.constant dense<0.000000e+00> : vector<64x32xf32>
    %5 = tpu.matmul %4, %0, %cst {dimension_numbers = #tpu.dot_dimension_numbers<[1], [0], [0], [1], [0, 0, 1, 1], [], []>} : vector<64x16xbf16>, vector<16x32xbf16>, vector<64x32xf32> -> vector<64x32xf32>
    %6 = vector.broadcast %1 : vector<1x32xf32> to vector<64x32xf32>
    %7 = arith.addf %5, %6 : vector<64x32xf32>
    %8 = math.tanh %7 : vector<64x32xf32>
    %9 = arith.truncf %8 : vector<64x32xf32> to vector<64x32xbf16>
    %10 = vector.shape_cast %9 : vector<64x32xbf16> to vector<8x8x32xbf16>
    %cst_9 = arith.constant 0.000000e+00 : bf16
    %11 = vector.broadcast %cst_9 : bf16 to vector<8x2x32xbf16>
    %12 = tpu.concatenate %10, %11 in 1 : vector<8x8x32xbf16>, vector<8x2x32xbf16> -> vector<8x10x32xbf16>
    %c0_10 = arith.constant 0 : index
    %c0_11 = arith.constant 0 : index
    %c0_12 = arith.constant 0 : index
    %13 = vector.load %arg3[%c0_10, %c0_11, %c0_12] : memref<8x10x16xbf16, #tpu.memory_space<vmem>>, vector<8x8x16xbf16>
    %14 = vector.shape_cast %13 : vector<8x8x16xbf16> to vector<64x16xbf16>
    %cst_13 = arith.constant dense<0.000000e+00> : vector<64x32xf32>
    %15 = tpu.matmul %14, %0, %cst_13 {dimension_numbers = #tpu.dot_dimension_numbers<[1], [0], [0], [1], [0, 0, 1, 1], [], []>} : vector<64x16xbf16>, vector<16x32xbf16>, vector<64x32xf32> -> vector<64x32xf32>
    %16 = vector.broadcast %1 : vector<1x32xf32> to vector<64x32xf32>
    %17 = arith.addf %15, %16 : vector<64x32xf32>
    %18 = math.tanh %17 : vector<64x32xf32>
    %19 = arith.truncf %18 : vector<64x32xf32> to vector<64x32xbf16>
    %20 = vector.shape_cast %19 : vector<64x32xbf16> to vector<8x8x32xbf16>
    %cst_14 = arith.constant 0.000000e+00 : bf16
    %21 = vector.broadcast %cst_14 : bf16 to vector<8x2x32xbf16>
    %22 = tpu.concatenate %20, %21 in 1 : vector<8x8x32xbf16>, vector<8x2x32xbf16> -> vector<8x10x32xbf16>
    %23 = vector.extract_strided_slice %2 {offsets = [0, 0, 0], sizes = [8, 8, 32], strides = [1, 1, 1]} : vector<8x10x32xbf16> to vector<8x8x32xbf16>
    %24 = vector.extract_strided_slice %2 {offsets = [0, 1, 0], sizes = [8, 8, 32], strides = [1, 1, 1]} : vector<8x10x32xbf16> to vector<8x8x32xbf16>
    %25 = vector.extract_strided_slice %12 {offsets = [0, 0, 0], sizes = [8, 8, 32], strides = [1, 1, 1]} : vector<8x10x32xbf16> to vector<8x8x32xbf16>
    %26 = vector.extract_strided_slice %12 {offsets = [0, 1, 0], sizes = [8, 8, 32], strides = [1, 1, 1]} : vector<8x10x32xbf16> to vector<8x8x32xbf16>
    %27 = vector.extract_strided_slice %22 {offsets = [0, 0, 0], sizes = [8, 8, 32], strides = [1, 1, 1]} : vector<8x10x32xbf16> to vector<8x8x32xbf16>
    %28 = vector.extract_strided_slice %22 {offsets = [0, 1, 0], sizes = [8, 8, 32], strides = [1, 1, 1]} : vector<8x10x32xbf16> to vector<8x8x32xbf16>
    %29 = tpu.concatenate %23, %24, %25, %26, %27, %28 in 2 : vector<8x8x32xbf16>, vector<8x8x32xbf16>, vector<8x8x32xbf16>, vector<8x8x32xbf16>, vector<8x8x32xbf16>, vector<8x8x32xbf16> -> vector<8x8x192xbf16>
    %30 = vector.shape_cast %29 : vector<8x8x192xbf16> to vector<64x192xbf16>
    %c0_15 = arith.constant 0 : index
    %c0_16 = arith.constant 0 : index
    %31 = vector.load %arg6[%c0_15, %c0_16] : memref<192x32xbf16, #tpu.memory_space<vmem>>, vector<192x32xbf16>
    %cst_17 = arith.constant dense<0.000000e+00> : vector<64x32xf32>
    %32 = tpu.matmul %30, %31, %cst_17 {dimension_numbers = #tpu.dot_dimension_numbers<[1], [0], [0], [1], [0, 0, 1, 1], [], []>} : vector<64x192xbf16>, vector<192x32xbf16>, vector<64x32xf32> -> vector<64x32xf32>
    %c0_18 = arith.constant 0 : index
    %c0_19 = arith.constant 0 : index
    %33 = vector.load %arg8[%c0_18, %c0_19] : memref<1x32xf32, #tpu.memory_space<vmem>>, vector<1x32xf32>
    %34 = vector.broadcast %33 : vector<1x32xf32> to vector<64x32xf32>
    %35 = arith.addf %32, %34 : vector<64x32xf32>
    %cst_20 = arith.constant 0.000000e+00 : f32
    %36 = vector.broadcast %cst_20 : f32 to vector<64x32xf32>
    %37 = arith.maximumf %35, %36 : vector<64x32xf32>
    %38 = vector.shape_cast %37 : vector<64x32xf32> to vector<8x8x32xf32>
    %39 = tpu.iota {dimensions = array<i32: 1>} : vector<8x8x32xi32>
    %c7_i32 = arith.constant 7 : i32
    %40 = vector.broadcast %c7_i32 : i32 to vector<8x8x32xi32>
    %41 = arith.cmpi slt, %39, %40 : vector<8x8x32xi32>
    %cst_21 = arith.constant 0.000000e+00 : f32
    %42 = vector.broadcast %cst_21 : f32 to vector<8x8x32xf32>
    %43 = arith.select %41, %38, %42 : vector<8x8x32xi1>, vector<8x8x32xf32>
    %cst_22 = arith.constant dense<0xFF800000> : vector<8x32xf32>
    %44 = vector.multi_reduction <maximumf>, %43, %cst_22 [1] : vector<8x8x32xf32> to vector<8x32xf32>
    %45 = vector.extract_strided_slice %2 {offsets = [0, 0, 0], sizes = [8, 8, 32], strides = [1, 1, 1]} : vector<8x10x32xbf16> to vector<8x8x32xbf16>
    %46 = vector.extract_strided_slice %2 {offsets = [0, 1, 0], sizes = [8, 8, 32], strides = [1, 1, 1]} : vector<8x10x32xbf16> to vector<8x8x32xbf16>
    %47 = vector.extract_strided_slice %2 {offsets = [0, 2, 0], sizes = [8, 8, 32], strides = [1, 1, 1]} : vector<8x10x32xbf16> to vector<8x8x32xbf16>
    %48 = vector.extract_strided_slice %12 {offsets = [0, 0, 0], sizes = [8, 8, 32], strides = [1, 1, 1]} : vector<8x10x32xbf16> to vector<8x8x32xbf16>
    %49 = vector.extract_strided_slice %12 {offsets = [0, 1, 0], sizes = [8, 8, 32], strides = [1, 1, 1]} : vector<8x10x32xbf16> to vector<8x8x32xbf16>
    %50 = vector.extract_strided_slice %12 {offsets = [0, 2, 0], sizes = [8, 8, 32], strides = [1, 1, 1]} : vector<8x10x32xbf16> to vector<8x8x32xbf16>
    %51 = vector.extract_strided_slice %22 {offsets = [0, 0, 0], sizes = [8, 8, 32], strides = [1, 1, 1]} : vector<8x10x32xbf16> to vector<8x8x32xbf16>
    %52 = vector.extract_strided_slice %22 {offsets = [0, 1, 0], sizes = [8, 8, 32], strides = [1, 1, 1]} : vector<8x10x32xbf16> to vector<8x8x32xbf16>
    %53 = vector.extract_strided_slice %22 {offsets = [0, 2, 0], sizes = [8, 8, 32], strides = [1, 1, 1]} : vector<8x10x32xbf16> to vector<8x8x32xbf16>
    %54 = tpu.concatenate %45, %46, %47, %48, %49, %50, %51, %52, %53 in 2 : vector<8x8x32xbf16>, vector<8x8x32xbf16>, vector<8x8x32xbf16>, vector<8x8x32xbf16>, vector<8x8x32xbf16>, vector<8x8x32xbf16>, vector<8x8x32xbf16>, vector<8x8x32xbf16>, vector<8x8x32xbf16> -> vector<8x8x288xbf16>
    %55 = vector.shape_cast %54 : vector<8x8x288xbf16> to vector<64x288xbf16>
    %c0_23 = arith.constant 0 : index
    %c0_24 = arith.constant 0 : index
    %56 = vector.load %arg7[%c0_23, %c0_24] : memref<288x32xbf16, #tpu.memory_space<vmem>>, vector<288x32xbf16>
    %cst_25 = arith.constant dense<0.000000e+00> : vector<64x32xf32>
    %57 = tpu.matmul %55, %56, %cst_25 {dimension_numbers = #tpu.dot_dimension_numbers<[1], [0], [0], [1], [0, 0, 1, 1], [], []>} : vector<64x288xbf16>, vector<288x32xbf16>, vector<64x32xf32> -> vector<64x32xf32>
    %c0_26 = arith.constant 0 : index
    %c0_27 = arith.constant 0 : index
    %58 = vector.load %arg9[%c0_26, %c0_27] : memref<1x32xf32, #tpu.memory_space<vmem>>, vector<1x32xf32>
    %59 = vector.broadcast %58 : vector<1x32xf32> to vector<64x32xf32>
    %60 = arith.addf %57, %59 : vector<64x32xf32>
    %cst_28 = arith.constant 0.000000e+00 : f32
    %61 = vector.broadcast %cst_28 : f32 to vector<64x32xf32>
    %62 = arith.maximumf %60, %61 : vector<64x32xf32>
    %63 = vector.shape_cast %62 : vector<64x32xf32> to vector<8x8x32xf32>
    %64 = tpu.iota {dimensions = array<i32: 1>} : vector<8x8x32xi32>
    %c6_i32 = arith.constant 6 : i32
    %65 = vector.broadcast %c6_i32 : i32 to vector<8x8x32xi32>
    %66 = arith.cmpi slt, %64, %65 : vector<8x8x32xi32>
    %cst_29 = arith.constant 0.000000e+00 : f32
    %67 = vector.broadcast %cst_29 : f32 to vector<8x8x32xf32>
    %68 = arith.select %66, %63, %67 : vector<8x8x32xi1>, vector<8x8x32xf32>
    %cst_30 = arith.constant dense<0xFF800000> : vector<8x32xf32>
    %69 = vector.multi_reduction <maximumf>, %68, %cst_30 [1] : vector<8x8x32xf32> to vector<8x32xf32>
    %70 = tpu.concatenate %44, %69 in 1 : vector<8x32xf32>, vector<8x32xf32> -> vector<8x64xf32>
    %c0_31 = arith.constant 0 : index
    %c0_32 = arith.constant 0 : index
    %71 = vector.load %arg10[%c0_31, %c0_32] : memref<8x64xf32, #tpu.memory_space<vmem>>, vector<8x64xf32>
    tpu.vector_store %arg10[%c0_31, %c0_32], %70 {strides = array<i32>} : memref<8x64xf32, #tpu.memory_space<vmem>>, vector<8x64xf32>,
    return
  }
  func.func @transform_0(%arg0: i32) -> (i32, i32, i32) {
    %c0_i32 = arith.constant 0 : i32
    %c0_i32_0 = arith.constant 0 : i32
    %c0_i32_1 = arith.constant 0 : i32
    return %arg0, %c0_i32, %c0_i32_0 : i32, i32, i32
  }
  func.func @transform_1(%arg0: i32) -> (i32, i32, i32) {
    %c0_i32 = arith.constant 0 : i32
    %c0_i32_0 = arith.constant 0 : i32
    %c0_i32_1 = arith.constant 0 : i32
    return %arg0, %c0_i32, %c0_i32_0 : i32, i32, i32
  }
  func.func @transform_2(%arg0: i32) -> (i32, i32, i32) {
    %c0_i32 = arith.constant 0 : i32
    %c0_i32_0 = arith.constant 0 : i32
    %c0_i32_1 = arith.constant 0 : i32
    return %arg0, %c0_i32, %c0_i32_0 : i32, i32, i32
  }
  func.func @transform_3(%arg0: i32) -> (i32, i32) {
    %c0_i32 = arith.constant 0 : i32
    %c0_i32_0 = arith.constant 0 : i32
    %c0_i32_1 = arith.constant 0 : i32
    return %c0_i32, %c0_i32_0 : i32, i32
  }
  func.func @transform_4(%arg0: i32) -> (i32, i32) {
    %c0_i32 = arith.constant 0 : i32
    %c0_i32_0 = arith.constant 0 : i32
    %c0_i32_1 = arith.constant 0 : i32
    return %c0_i32, %c0_i32_0 : i32, i32
  }
  func.func @transform_5(%arg0: i32) -> (i32, i32) {
    %c0_i32 = arith.constant 0 : i32
    %c0_i32_0 = arith.constant 0 : i32
    %c0_i32_1 = arith.constant 0 : i32
    return %c0_i32, %c0_i32_0 : i32, i32
  }
  func.func @transform_6(%arg0: i32) -> (i32, i32) {
    %c0_i32 = arith.constant 0 : i32
    %c0_i32_0 = arith.constant 0 : i32
    %c0_i32_1 = arith.constant 0 : i32
    return %c0_i32, %c0_i32_0 : i32, i32
  }
  func.func @transform_7(%arg0: i32) -> (i32, i32) {
    %c0_i32 = arith.constant 0 : i32
    %c0_i32_0 = arith.constant 0 : i32
    %c0_i32_1 = arith.constant 0 : i32
    return %c0_i32, %c0_i32_0 : i32, i32
  }
  func.func @transform_8(%arg0: i32) -> (i32, i32) {
    %c0_i32 = arith.constant 0 : i32
    %c0_i32_0 = arith.constant 0 : i32
    %c0_i32_1 = arith.constant 0 : i32
    return %c0_i32, %c0_i32_0 : i32, i32
  }
  func.func @transform_9(%arg0: i32) -> (i32, i32) {
    %c0_i32 = arith.constant 0 : i32
    %c0_i32_0 = arith.constant 0 : i32
    return %arg0, %c0_i32 : i32, i32
  }
}

</mosaic_0001>

<llo_original>
// kernel: tpu_custom_call.1
$region0: #{tpu_custom_call.1}
  #allocation0 [shape = 'u32[]', space=smem, size = 0x4, offset = 0x4, fixed_abs, tag = 'smem constant byte address 0x4 - core index']
  #allocation1 [shape = 'u32[144,128]{1,0:T(1,128)}', space=vmem, size = 0x12000, scoped, tag = 'internal scratch']
  %s0 = inlined_call_operand.vmem [shape: bf16[8,10,32], index: 0, kind: input, shape index: {}]
  %s1 = inlined_call_operand.vmem [shape: bf16[8,10,16], index: 1, kind: input, shape index: {}]
  %s2 = inlined_call_operand.vmem [shape: bf16[8,10,16], index: 2, kind: input, shape index: {}]
  %s3 = inlined_call_operand.vmem [shape: bf16[16,32], index: 3, kind: input, shape index: {}]
  %s4 = inlined_call_operand.vmem [shape: f32[1,32], index: 4, kind: input, shape index: {}]
  %s5 = inlined_call_operand.vmem [shape: bf16[192,32], index: 5, kind: input, shape index: {}]
  %s6 = inlined_call_operand.vmem [shape: bf16[288,32], index: 6, kind: input, shape index: {}]
  %s7 = inlined_call_operand.vmem [shape: f32[1,32], index: 7, kind: input, shape index: {}]
  %s8 = inlined_call_operand.vmem [shape: f32[1,32], index: 8, kind: input, shape index: {}]
  %s9 = inlined_call_operand.hbm [shape: f32[8,64], index: 9, kind: output, shape index: {}]
  %s10 = sld [smem:[#allocation0]]
  $region46: #{tpu_custom_call.1} parent=0
    _
  %s12 = ssub.s32 1, %s10
  %s13 = scalar_select 0, %s12, %s10
  $region1: #{tpu_custom_call.1} parent=0
    #allocation2 [shape = 'u8[4096]{0}', space=vmem, size = 0x1000, scoped, tag = 'output window, operand 0, single buffered']
    #allocation3 [shape = 's32[1]{0}', space=sflag, size = 0x4, scoped, tag = 'scoped memory for tpu_custom_call.1']
    %14 = vsyncpa [#allocation3], 0
    // Predicated region
    $region2: #{tpu_custom_call.1} parent=1 // pred_check
      _
    $region3: #{tpu_custom_call.1} parent=1 // pred_check_branch
      %16 = sbr.rel (0) target = $region5
    $region4: #{tpu_custom_call.1} parent=1 // pred_region
      _
    $region5: #{tpu_custom_call.1} parent=1 // pred_fallthru
      _
    // Predicated region
    $region6: #{tpu_custom_call.1} parent=1 // pred_check
      _
    $region7: #{tpu_custom_call.1} parent=1 // pred_check_branch
      %18 = sbr.rel (0) target = $region9
    $region8: #{tpu_custom_call.1} parent=1 // pred_region
      _
    $region9: #{tpu_custom_call.1} parent=1 // pred_fallthru
      _
    // Predicated region
    $region10: #{tpu_custom_call.1} parent=1 // pred_check
      _
    $region11: #{tpu_custom_call.1} parent=1 // pred_check_branch
      %20 = sbr.rel (0) target = $region13
    $region12: #{tpu_custom_call.1} parent=1 // pred_region
      _
    $region13: #{tpu_custom_call.1} parent=1 // pred_fallthru
      _
    // Predicated region
    $region14: #{tpu_custom_call.1} parent=1 // pred_check
      _
    $region15: #{tpu_custom_call.1} parent=1 // pred_check_branch
      %22 = sbr.rel (0) target = $region17
    $region16: #{tpu_custom_call.1} parent=1 // pred_region
      _
    $region17: #{tpu_custom_call.1} parent=1 // pred_fallthru
      _
    // Predicated region
    $region18: #{tpu_custom_call.1} parent=1 // pred_check
      _
    $region19: #{tpu_custom_call.1} parent=1 // pred_check_branch
      %24 = sbr.rel (0) target = $region21
    $region20: #{tpu_custom_call.1} parent=1 // pred_region
      _
    $region21: #{tpu_custom_call.1} parent=1 // pred_fallthru
      _
    // Predicated region
    $region22: #{tpu_custom_call.1} parent=1 // pred_check
      _
    $region23: #{tpu_custom_call.1} parent=1 // pred_check_branch
      %26 = sbr.rel (0) target = $region25
    $region24: #{tpu_custom_call.1} parent=1 // pred_region
      _
    $region25: #{tpu_custom_call.1} parent=1 // pred_fallthru
      _
    // Predicated region
    $region26: #{tpu_custom_call.1} parent=1 // pred_check
      _
    $region27: #{tpu_custom_call.1} parent=1 // pred_check_branch
      %28 = sbr.rel (0) target = $region29
    $region28: #{tpu_custom_call.1} parent=1 // pred_region
      _
    $region29: #{tpu_custom_call.1} parent=1 // pred_fallthru
      _
    // Predicated region
    $region30: #{tpu_custom_call.1} parent=1 // pred_check
      _
    $region31: #{tpu_custom_call.1} parent=1 // pred_check_branch
      %30 = sbr.rel (0) target = $region33
    $region32: #{tpu_custom_call.1} parent=1 // pred_region
      _
    $region33: #{tpu_custom_call.1} parent=1 // pred_fallthru
      _
    // Predicated region
    $region34: #{tpu_custom_call.1} parent=1 // pred_check
      _
    $region35: #{tpu_custom_call.1} parent=1 // pred_check_branch
      %32 = sbr.rel (0) target = $region37
    $region36: #{tpu_custom_call.1} parent=1 // pred_region
      _
    $region37: #{tpu_custom_call.1} parent=1 // pred_fallthru
      _
    %v34 = vld [vmem:[%s3] sm:$0xf]
    %v35 = vld [vmem:[%s3 + $0x4] sm:$0xf]
    %v36 = vld [vmem:[%s4] sm:$0x1]
    %v37 = vld [vmem:[%s0] sm:$0xf]
    %v38 = vld [vmem:[%s0 + $0x4] sm:$0x1]
    %v39 = vld [vmem:[%s0 + $0x8] sm:$0xf]
    %v40 = vld [vmem:[%s0 + $0xc] sm:$0x1]
    %v41 = vld [vmem:[%s0 + $0x10] sm:$0xf]
    %v42 = vld [vmem:[%s0 + $0x14] sm:$0x1]
    %v43 = vld [vmem:[%s0 + $0x18] sm:$0xf]
    %v44 = vld [vmem:[%s0 + $0x1c] sm:$0x1]
    %v45 = vld [vmem:[%s0 + $0x20] sm:$0xf]
    %v46 = vld [vmem:[%s0 + $0x24] sm:$0x1]
    %v47 = vld [vmem:[%s0 + $0x28] sm:$0xf]
    %v48 = vld [vmem:[%s0 + $0x2c] sm:$0x1]
    %v49 = vld [vmem:[%s0 + $0x30] sm:$0xf]
    %v50 = vld [vmem:[%s0 + $0x34] sm:$0x1]
    %v51 = vld [vmem:[%s0 + $0x38] sm:$0xf]
    %v52 = vld [vmem:[%s0 + $0x3c] sm:$0x1]
    %v53 = vld [vmem:[%s1] sm:$0xf]
    %v54 = vld [vmem:[%s1 + $0x8] sm:$0xf]
    %v55 = vld [vmem:[%s1 + $0x10] sm:$0xf]
    %v56 = vld [vmem:[%s1 + $0x18] sm:$0xf]
    %v57 = vld [vmem:[%s1 + $0x20] sm:$0xf]
    %v58 = vld [vmem:[%s1 + $0x28] sm:$0xf]
    %v59 = vld [vmem:[%s1 + $0x30] sm:$0xf]
    %v60 = vld [vmem:[%s1 + $0x38] sm:$0xf]
    %v62 = vlaneseq
    %v63 = vshrl.u32 %v62, 7
    %v64 = vsub.s32 0, %v63
    %v65 = vrot.slane %v36, %v64
    %v75 = vunpack.c.l.b16 %v53
    %v76 = vunpack.c.l.b16 %v54
    %v77 = vunpack.c.l.b16 %v55
    %v78 = vunpack.c.l.b16 %v56
    %v79 = vunpack.c.l.b16 %v57
    %v80 = vunpack.c.l.b16 %v58
    %v81 = vunpack.c.l.b16 %v59
    %v82 = vunpack.c.l.b16 %v60
    %v83 = vpack.c.b16 %v76, %v75
    %v84 = vpack.c.b16 %v78, %v77
    %v85 = vpack.c.b16 %v80, %v79
    %v86 = vpack.c.b16 %v82, %v81
    %v89 = vunpack.c.l.b16 %v34
    %v90 = vunpack.c.l.b16 %v35
    %v91 = vpack.c.b16 %v90, %v89
    %vm93 = vcmask 130048
    %v95 = vsel %vm93, %v83, 0
    %v98 = vsel %vm93, %v84, 0
    %v101 = vsel %vm93, %v85, 0
    %v104 = vsel %vm93, %v86, 0
    %106 = vmatprep.subr.bf16.mxu0 0
    %107 = vmatpush1.bf16.msra.mxu0 %v91
    %108 = vmatprep.subr.bf16.mxu0 0
    %109 = vmatpush1.bf16.msra.mxu0 0
    %110 = vmatprep.subr.bf16.mxu0 0
    %111 = vmatpush1.bf16.msra.mxu0 0
    %112 = vmatprep.subr.bf16.mxu0 0
    %113 = vmatpush1.bf16.msra.mxu0 0
    %114 = vmatprep.subr.bf16.mxu0 0
    %115 = vmatpush1.bf16.msra.mxu0 0
    %116 = vmatprep.subr.bf16.mxu0 0
    %117 = vmatpush1.bf16.msra.mxu0 0
    %118 = vmatprep.subr.bf16.mxu0 0
    %119 = vmatpush1.bf16.msra.mxu0 0
    %120 = vmatprep.subr.bf16.mxu0 0
    %121 = vmatpush1.bf16.msra.mxu0 0
    %122 = vmatprep.subr.bf16.mxu0 0
    %123 = vmatpush1.bf16.msra.mxu0 0
    %124 = vmatprep.subr.bf16.mxu0 0
    %125 = vmatpush1.bf16.msra.mxu0 0
    %126 = vmatprep.subr.bf16.mxu0 0
    %127 = vmatpush1.bf16.msra.mxu0 0
    %128 = vmatprep.subr.bf16.mxu0 0
    %129 = vmatpush1.bf16.msra.mxu0 0
    %130 = vmatprep.subr.bf16.mxu0 0
    %131 = vmatpush1.bf16.msra.mxu0 0
    %132 = vmatprep.subr.bf16.mxu0 0
    %133 = vmatpush1.bf16.msra.mxu0 0
    %134 = vmatprep.subr.bf16.mxu0 0
    %135 = vmatpush1.bf16.msra.mxu0 0
    %136 = vmatprep.subr.bf16.mxu0 0
    %137 = vmatpush1.bf16.msra.mxu0 0
    %138 = vmatprep.mubr.bf16.mxu0 0
    %139 = vmatmul.mubr.bf16.gmra.mrb[0].mxu0 %v95
    %v140 = vpop.f32.mrb[0].mxu0
    %v141 = vadd.f32 %v65, %v140
    %v142 = vpop.f32.mrb[0].mxu0
    %v143 = vpop.f32.mrb[0].mxu0
    %v144 = vadd.f32 %v65, %v143
    %v145 = vpop.f32.mrb[0].mxu0
    %146 = vmatprep.mubr.bf16.mxu0 0
    %147 = vmatmul.mubr.bf16.gmra.mrb[0].mxu0 %v98
    %v148 = vpop.f32.mrb[0].mxu0
    %v149 = vadd.f32 %v65, %v148
    %v150 = vpop.f32.mrb[0].mxu0
    %v151 = vpop.f32.mrb[0].mxu0
    %v152 = vadd.f32 %v65, %v151
    %v153 = vpop.f32.mrb[0].mxu0
    %154 = vmatprep.mubr.bf16.mxu0 0
    %155 = vmatmul.mubr.bf16.gmra.mrb[0].mxu0 %v101
    %v156 = vpop.f32.mrb[0].mxu0
    %v157 = vadd.f32 %v65, %v156
    %v158 = vpop.f32.mrb[0].mxu0
    %v159 = vpop.f32.mrb[0].mxu0
    %v160 = vadd.f32 %v65, %v159
    %v161 = vpop.f32.mrb[0].mxu0
    %162 = vmatprep.mubr.bf16.mxu0 0
    %163 = vmatmul.mubr.bf16.gmra.mrb[0].mxu0 %v104
    %v164 = vpop.f32.mrb[0].mxu0
    %v165 = vadd.f32 %v65, %v164
    %v166 = vpop.f32.mrb[0].mxu0
    %v167 = vpop.f32.mrb[0].mxu0
    %v168 = vadd.f32 %v65, %v167
    %v169 = vpop.f32.mrb[0].mxu0
    %170 = vdwg.mxu0
    %v171 = vtanh.pop %v141
    %v172 = vtanh.pop %v144
    %v173 = vtanh.pop %v149
    %v174 = vtanh.pop %v152
    %v175 = vtanh.pop %v157
    %v176 = vtanh.pop %v160
    %v177 = vtanh.pop %v165
    %v178 = vtanh.pop %v168
    %v179 = vpack.c.bf16 %v172, %v171
    %v180 = vpack.c.bf16 %v174, %v173
    %v181 = vpack.c.bf16 %v176, %v175
    %v182 = vpack.c.bf16 %v178, %v177
    %v187 = vunpack.c.l.b16 %v179
    %v188 = vunpack.c.h.b16 %v179
    %v189 = vunpack.c.l.b16 %v180
    %v190 = vunpack.c.h.b16 %v180
    %v191 = vunpack.c.l.b16 %v181
    %v192 = vunpack.c.h.b16 %v181
    %v193 = vunpack.c.l.b16 %v182
    %v194 = vunpack.c.h.b16 %v182
    %v195 = vpack.c.b16 %v187, %v187
    %v196 = vpack.c.b16 %v188, %v188
    %v197 = vpack.c.b16 %v189, %v189
    %v198 = vpack.c.b16 %v190, %v190
    %v199 = vpack.c.b16 %v191, %v191
    %v200 = vpack.c.b16 %v192, %v192
    %v201 = vpack.c.b16 %v193, %v193
    %v202 = vpack.c.b16 %v194, %v194
    %vm203 = vcmask 1043456
    %v206 = vsel %vm203, %v195, 0
    %v208 = vsel %vm203, %v196, 0
    %v210 = vsel %vm203, %v197, 0
    %v212 = vsel %vm203, %v198, 0
    %v214 = vsel %vm203, %v199, 0
    %v216 = vsel %vm203, %v200, 0
    %v218 = vsel %vm203, %v201, 0
    %v220 = vsel %vm203, %v202, 0
    %v221 = vld [vmem:[%s2] sm:$0xf]
    %v222 = vld [vmem:[%s2 + $0x8] sm:$0xf]
    %v223 = vld [vmem:[%s2 + $0x10] sm:$0xf]
    %v224 = vld [vmem:[%s2 + $0x18] sm:$0xf]
    %v225 = vld [vmem:[%s2 + $0x20] sm:$0xf]
    %v226 = vld [vmem:[%s2 + $0x28] sm:$0xf]
    %v227 = vld [vmem:[%s2 + $0x30] sm:$0xf]
    %v228 = vld [vmem:[%s2 + $0x38] sm:$0xf]
    %v237 = vunpack.c.l.b16 %v221
    %v238 = vunpack.c.l.b16 %v222
    %v239 = vunpack.c.l.b16 %v223
    %v240 = vunpack.c.l.b16 %v224
    %v241 = vunpack.c.l.b16 %v225
    %v242 = vunpack.c.l.b16 %v226
    %v243 = vunpack.c.l.b16 %v227
    %v244 = vunpack.c.l.b16 %v228
    %v245 = vpack.c.b16 %v238, %v237
    %v246 = vpack.c.b16 %v240, %v239
    %v247 = vpack.c.b16 %v242, %v241
    %v248 = vpack.c.b16 %v244, %v243
    %v250 = vsel %vm93, %v245, 0
    %v253 = vsel %vm93, %v246, 0
    %v256 = vsel %vm93, %v247, 0
    %v259 = vsel %vm93, %v248, 0
    %261 = vmatprep.subr.bf16.mxu0 0
    %262 = vmatpush1.bf16.msra.mxu0 %v91
    %263 = vmatprep.subr.bf16.mxu0 0
    %264 = vmatpush1.bf16.msra.mxu0 0
    %265 = vmatprep.subr.bf16.mxu0 0
    %266 = vmatpush1.bf16.msra.mxu0 0
    %267 = vmatprep.subr.bf16.mxu0 0
    %268 = vmatpush1.bf16.msra.mxu0 0
    %269 = vmatprep.subr.bf16.mxu0 0
    %270 = vmatpush1.bf16.msra.mxu0 0
    %271 = vmatprep.subr.bf16.mxu0 0
    %272 = vmatpush1.bf16.msra.mxu0 0
    %273 = vmatprep.subr.bf16.mxu0 0
    %274 = vmatpush1.bf16.msra.mxu0 0
    %275 = vmatprep.subr.bf16.mxu0 0
    %276 = vmatpush1.bf16.msra.mxu0 0
    %277 = vmatprep.subr.bf16.mxu0 0
    %278 = vmatpush1.bf16.msra.mxu0 0
    %279 = vmatprep.subr.bf16.mxu0 0
    %280 = vmatpush1.bf16.msra.mxu0 0
    %281 = vmatprep.subr.bf16.mxu0 0
    %282 = vmatpush1.bf16.msra.mxu0 0
    %283 = vmatprep.subr.bf16.mxu0 0
    %284 = vmatpush1.bf16.msra.mxu0 0
    %285 = vmatprep.subr.bf16.mxu0 0
    %286 = vmatpush1.bf16.msra.mxu0 0
    %287 = vmatprep.subr.bf16.mxu0 0
    %288 = vmatpush1.bf16.msra.mxu0 0
    %289 = vmatprep.subr.bf16.mxu0 0
    %290 = vmatpush1.bf16.msra.mxu0 0
    %291 = vmatprep.subr.bf16.mxu0 0
    %292 = vmatpush1.bf16.msra.mxu0 0
    %293 = vmatprep.mubr.bf16.mxu0 0
    %294 = vmatmul.mubr.bf16.gmra.mrb[0].mxu0 %v250
    %v295 = vpop.f32.mrb[0].mxu0
    %v296 = vadd.f32 %v65, %v295
    %v297 = vpop.f32.mrb[0].mxu0
    %v298 = vpop.f32.mrb[0].mxu0
    %v299 = vadd.f32 %v65, %v298
    %v300 = vpop.f32.mrb[0].mxu0
    %301 = vmatprep.mubr.bf16.mxu0 0
    %302 = vmatmul.mubr.bf16.gmra.mrb[0].mxu0 %v253
    %v303 = vpop.f32.mrb[0].mxu0
    %v304 = vadd.f32 %v65, %v303
    %v305 = vpop.f32.mrb[0].mxu0
    %v306 = vpop.f32.mrb[0].mxu0
    %v307 = vadd.f32 %v65, %v306
    %v308 = vpop.f32.mrb[0].mxu0
    %309 = vmatprep.mubr.bf16.mxu0 0
    %310 = vmatmul.mubr.bf16.gmra.mrb[0].mxu0 %v256
    %v311 = vpop.f32.mrb[0].mxu0
    %v312 = vadd.f32 %v65, %v311
    %v313 = vpop.f32.mrb[0].mxu0
    %v314 = vpop.f32.mrb[0].mxu0
    %v315 = vadd.f32 %v65, %v314
    %v316 = vpop.f32.mrb[0].mxu0
    %317 = vmatprep.mubr.bf16.mxu0 0
    %318 = vmatmul.mubr.bf16.gmra.mrb[0].mxu0 %v259
    %v319 = vpop.f32.mrb[0].mxu0
    %v320 = vadd.f32 %v65, %v319
    %v321 = vpop.f32.mrb[0].mxu0
    %v322 = vpop.f32.mrb[0].mxu0
    %v323 = vadd.f32 %v65, %v322
    %v324 = vpop.f32.mrb[0].mxu0
    %325 = vdwg.mxu0
    %v326 = vtanh.pop %v296
    %v327 = vtanh.pop %v299
    %v328 = vtanh.pop %v304
    %v329 = vtanh.pop %v307
    %v330 = vtanh.pop %v312
    %v331 = vtanh.pop %v315
    %v332 = vtanh.pop %v320
    %v333 = vtanh.pop %v323
    %v334 = vpack.c.bf16 %v327, %v326
    %v335 = vpack.c.bf16 %v329, %v328
    %v336 = vpack.c.bf16 %v331, %v330
    %v337 = vpack.c.bf16 %v333, %v332
    %v342 = vunpack.c.l.b16 %v334
    %v343 = vunpack.c.h.b16 %v334
    %v344 = vunpack.c.l.b16 %v335
    %v345 = vunpack.c.h.b16 %v335
    %v346 = vunpack.c.l.b16 %v336
    %v347 = vunpack.c.h.b16 %v336
    %v348 = vunpack.c.l.b16 %v337
    %v349 = vunpack.c.h.b16 %v337
    %v350 = vpack.c.b16 %v342, %v342
    %v351 = vpack.c.b16 %v343, %v343
    %v352 = vpack.c.b16 %v344, %v344
    %v353 = vpack.c.b16 %v345, %v345
    %v354 = vpack.c.b16 %v346, %v346
    %v355 = vpack.c.b16 %v347, %v347
    %v356 = vpack.c.b16 %v348, %v348
    %v357 = vpack.c.b16 %v349, %v349
    %v359 = vsel %vm203, %v350, 0
    %v361 = vsel %vm203, %v351, 0
    %v363 = vsel %vm203, %v352, 0
    %v365 = vsel %vm203, %v353, 0
    %v367 = vsel %vm203, %v354, 0
    %v369 = vsel %vm203, %v355, 0
    %v371 = vsel %vm203, %v356, 0
    %v373 = vsel %vm203, %v357, 0
    %v390 = vunpack.c.l.b16 %v37
    %v391 = vunpack.c.l.b16 %v38
    %v392 = vunpack.c.l.b16 %v39
    %v393 = vunpack.c.l.b16 %v40
    %v394 = vunpack.c.l.b16 %v41
    %v395 = vunpack.c.l.b16 %v42
    %v396 = vunpack.c.l.b16 %v43
    %v397 = vunpack.c.l.b16 %v44
    %v398 = vunpack.c.l.b16 %v45
    %v399 = vunpack.c.l.b16 %v46
    %v400 = vunpack.c.l.b16 %v47
    %v401 = vunpack.c.l.b16 %v48
    %v402 = vunpack.c.l.b16 %v49
    %v403 = vunpack.c.l.b16 %v50
    %v404 = vunpack.c.l.b16 %v51
    %v405 = vunpack.c.l.b16 %v52
    %v406 = vpack.c.b16 %v391, %v390
    %v407 = vpack.c.b16 %v393, %v392
    %v408 = vpack.c.b16 %v395, %v394
    %v409 = vpack.c.b16 %v397, %v396
    %v410 = vpack.c.b16 %v399, %v398
    %v411 = vpack.c.b16 %v401, %v400
    %v412 = vpack.c.b16 %v403, %v402
    %v413 = vpack.c.b16 %v405, %v404
    %v415 = vshrl.u32 %v406, 16
    %v417 = vshll.u32 %v406, 16
    %v419 = vrot.slane %v417, 1
    %v420 = vor.u32 %v415, %v419
    %v422 = vshrl.u32 %v407, 16
    %v424 = vshll.u32 %v407, 16
    %v426 = vrot.slane %v424, 1
    %v427 = vor.u32 %v422, %v426
    %v429 = vshrl.u32 %v408, 16
    %v431 = vshll.u32 %v408, 16
    %v433 = vrot.slane %v431, 1
    %v434 = vor.u32 %v429, %v433
    %v436 = vshrl.u32 %v409, 16
    %v438 = vshll.u32 %v409, 16
    %v440 = vrot.slane %v438, 1
    %v441 = vor.u32 %v436, %v440
    %v443 = vshrl.u32 %v410, 16
    %v445 = vshll.u32 %v410, 16
    %v447 = vrot.slane %v445, 1
    %v448 = vor.u32 %v443, %v447
    %v450 = vshrl.u32 %v411, 16
    %v452 = vshll.u32 %v411, 16
    %v454 = vrot.slane %v452, 1
    %v455 = vor.u32 %v450, %v454
    %v457 = vshrl.u32 %v412, 16
    %v459 = vshll.u32 %v412, 16
    %v461 = vrot.slane %v459, 1
    %v462 = vor.u32 %v457, %v461
    %v464 = vshrl.u32 %v413, 16
    %v466 = vshll.u32 %v413, 16
    %v468 = vrot.slane %v466, 1
    %v469 = vor.u32 %v464, %v468
    %470 = vrot.lane.b32.xlu0 %v420, 32
    %v471 = vpop.permute.xlu0 %470
    %472 = vrot.lane.b32.xlu0 %v427, 32
    %v473 = vpop.permute.xlu0 %472
    %474 = vrot.lane.b32.xlu0 %v434, 32
    %v475 = vpop.permute.xlu0 %474
    %476 = vrot.lane.b32.xlu0 %v441, 32
    %v477 = vpop.permute.xlu0 %476
    %478 = vrot.lane.b32.xlu0 %v448, 32
    %v479 = vpop.permute.xlu0 %478
    %480 = vrot.lane.b32.xlu0 %v455, 32
    %v481 = vpop.permute.xlu0 %480
    %482 = vrot.lane.b32.xlu0 %v462, 32
    %v483 = vpop.permute.xlu0 %482
    %484 = vrot.lane.b32.xlu0 %v469, 32
    %v485 = vpop.permute.xlu0 %484
    %494 = vrot.lane.b32.xlu0 %v206, 64
    %v495 = vpop.permute.xlu0 %494
    %496 = vrot.lane.b32.xlu0 %v208, 64
    %v497 = vpop.permute.xlu0 %496
    %498 = vrot.lane.b32.xlu0 %v210, 64
    %v499 = vpop.permute.xlu0 %498
    %500 = vrot.lane.b32.xlu0 %v212, 64
    %v501 = vpop.permute.xlu0 %500
    %502 = vrot.lane.b32.xlu0 %v214, 64
    %v503 = vpop.permute.xlu0 %502
    %504 = vrot.lane.b32.xlu0 %v216, 64
    %v505 = vpop.permute.xlu0 %504
    %506 = vrot.lane.b32.xlu0 %v218, 64
    %v507 = vpop.permute.xlu0 %506
    %508 = vrot.lane.b32.xlu0 %v220, 64
    %v509 = vpop.permute.xlu0 %508
    %v510 = vshrl.u32 %v206, 16
    %v512 = vshll.u32 %v206, 16
    %v514 = vrot.slane %v512, 1
    %v515 = vor.u32 %v510, %v514
    %v516 = vshrl.u32 %v208, 16
    %v518 = vshll.u32 %v208, 16
    %v520 = vrot.slane %v518, 1
    %v521 = vor.u32 %v516, %v520
    %v522 = vshrl.u32 %v210, 16
    %v524 = vshll.u32 %v210, 16
    %v526 = vrot.slane %v524, 1
    %v527 = vor.u32 %v522, %v526
    %v528 = vshrl.u32 %v212, 16
    %v530 = vshll.u32 %v212, 16
    %v532 = vrot.slane %v530, 1
    %v533 = vor.u32 %v528, %v532
    %v534 = vshrl.u32 %v214, 16
    %v536 = vshll.u32 %v214, 16
    %v538 = vrot.slane %v536, 1
    %v539 = vor.u32 %v534, %v538
    %v540 = vshrl.u32 %v216, 16
    %v542 = vshll.u32 %v216, 16
    %v544 = vrot.slane %v542, 1
    %v545 = vor.u32 %v540, %v544
    %v546 = vshrl.u32 %v218, 16
    %v548 = vshll.u32 %v218, 16
    %v550 = vrot.slane %v548, 1
    %v551 = vor.u32 %v546, %v550
    %v552 = vshrl.u32 %v220, 16
    %v554 = vshll.u32 %v220, 16
    %v556 = vrot.slane %v554, 1
    %v557 = vor.u32 %v552, %v556
    %558 = vrot.lane.b32.xlu0 %v515, 96
    %v559 = vpop.permute.xlu0 %558
    %560 = vrot.lane.b32.xlu0 %v521, 96
    %v561 = vpop.permute.xlu0 %560
    %562 = vrot.lane.b32.xlu0 %v527, 96
    %v563 = vpop.permute.xlu0 %562
    %564 = vrot.lane.b32.xlu0 %v533, 96
    %v565 = vpop.permute.xlu0 %564
    %566 = vrot.lane.b32.xlu0 %v539, 96
    %v567 = vpop.permute.xlu0 %566
    %568 = vrot.lane.b32.xlu0 %v545, 96
    %v569 = vpop.permute.xlu0 %568
    %570 = vrot.lane.b32.xlu0 %v551, 96
    %v571 = vpop.permute.xlu0 %570
    %572 = vrot.lane.b32.xlu0 %v557, 96
    %v573 = vpop.permute.xlu0 %572
    %v574 = vshrl.u32 %v359, 16
    %v576 = vshll.u32 %v359, 16
    %v578 = vrot.slane %v576, 1
    %v579 = vor.u32 %v574, %v578
    %v580 = vshrl.u32 %v361, 16
    %v582 = vshll.u32 %v361, 16
    %v584 = vrot.slane %v582, 1
    %v585 = vor.u32 %v580, %v584
    %v586 = vshrl.u32 %v363, 16
    %v588 = vshll.u32 %v363, 16
    %v590 = vrot.slane %v588, 1
    %v591 = vor.u32 %v586, %v590
    %v592 = vshrl.u32 %v365, 16
    %v594 = vshll.u32 %v365, 16
    %v596 = vrot.slane %v594, 1
    %v597 = vor.u32 %v592, %v596
    %v598 = vshrl.u32 %v367, 16
    %v600 = vshll.u32 %v367, 16
    %v602 = vrot.slane %v600, 1
    %v603 = vor.u32 %v598, %v602
    %v604 = vshrl.u32 %v369, 16
    %v606 = vshll.u32 %v369, 16
    %v608 = vrot.slane %v606, 1
    %v609 = vor.u32 %v604, %v608
    %v610 = vshrl.u32 %v371, 16
    %v612 = vshll.u32 %v371, 16
    %v614 = vrot.slane %v612, 1
    %v615 = vor.u32 %v610, %v614
    %v616 = vshrl.u32 %v373, 16
    %v618 = vshll.u32 %v373, 16
    %v620 = vrot.slane %v618, 1
    %v621 = vor.u32 %v616, %v620
    %622 = vrot.lane.b32.xlu0 %v579, 32
    %v623 = vpop.permute.xlu0 %622
    %624 = vrot.lane.b32.xlu0 %v585, 32
    %v625 = vpop.permute.xlu0 %624
    %626 = vrot.lane.b32.xlu0 %v591, 32
    %v627 = vpop.permute.xlu0 %626
    %628 = vrot.lane.b32.xlu0 %v597, 32
    %v629 = vpop.permute.xlu0 %628
    %630 = vrot.lane.b32.xlu0 %v603, 32
    %v631 = vpop.permute.xlu0 %630
    %632 = vrot.lane.b32.xlu0 %v609, 32
    %v633 = vpop.permute.xlu0 %632
    %634 = vrot.lane.b32.xlu0 %v615, 32
    %v635 = vpop.permute.xlu0 %634
    %636 = vrot.lane.b32.xlu0 %v621, 32
    %v637 = vpop.permute.xlu0 %636
    %vm638 = vcmask 261120
    %v641 = vsel %vm638, %v37, %v471
    %v644 = vsel %vm638, %v39, %v473
    %v647 = vsel %vm638, %v41, %v475
    %v650 = vsel %vm638, %v43, %v477
    %v653 = vsel %vm638, %v45, %v479
    %v656 = vsel %vm638, %v47, %v481
    %v659 = vsel %vm638, %v49, %v483
    %v662 = vsel %vm638, %v51, %v485
    %vm663 = vcmask 523264
    %v665 = vsel %vm663, %v641, %v495
    %v667 = vsel %vm663, %v644, %v497
    %v669 = vsel %vm663, %v647, %v499
    %v671 = vsel %vm663, %v650, %v501
    %v673 = vsel %vm663, %v653, %v503
    %v675 = vsel %vm663, %v656, %v505
    %v677 = vsel %vm663, %v659, %v507
    %v679 = vsel %vm663, %v662, %v509
    %vm680 = vcmask 785408
    %v682 = vsel %vm680, %v665, %v559
    %v684 = vsel %vm680, %v667, %v561
    %v686 = vsel %vm680, %v669, %v563
    %v688 = vsel %vm680, %v671, %v565
    %v690 = vsel %vm680, %v673, %v567
    %v692 = vsel %vm680, %v675, %v569
    %v694 = vsel %vm680, %v677, %v571
    %v696 = vsel %vm680, %v679, %v573
    %v698 = vsel %vm638, %v359, %v623
    %v700 = vsel %vm638, %v361, %v625
    %v702 = vsel %vm638, %v363, %v627
    %v704 = vsel %vm638, %v365, %v629
    %v706 = vsel %vm638, %v367, %v631
    %v708 = vsel %vm638, %v369, %v633
    %v710 = vsel %vm638, %v371, %v635
    %v712 = vsel %vm638, %v373, %v637
    %v729 = vunpack.c.l.b16 %v682
    %v730 = vunpack.c.l.b16 %v698
    %v731 = vunpack.c.l.b16 %v684
    %v732 = vunpack.c.l.b16 %v700
    %v733 = vunpack.c.l.b16 %v686
    %v734 = vunpack.c.l.b16 %v702
    %v735 = vunpack.c.l.b16 %v688
    %v736 = vunpack.c.l.b16 %v704
    %v737 = vunpack.c.l.b16 %v690
    %v738 = vunpack.c.l.b16 %v706
    %v739 = vunpack.c.l.b16 %v692
    %v740 = vunpack.c.l.b16 %v708
    %v741 = vunpack.c.l.b16 %v694
    %v742 = vunpack.c.l.b16 %v710
    %v743 = vunpack.c.l.b16 %v696
    %v744 = vunpack.c.l.b16 %v712
    %v745 = vld [vmem:[%s5] sm:$0xf]
    %v746 = vld [vmem:[%s5 + $0x4] sm:$0xf]
    %v747 = vld [vmem:[%s5 + $0x8] sm:$0xf]
    %v748 = vld [vmem:[%s5 + $0xc] sm:$0xf]
    %v749 = vld [vmem:[%s5 + $0x10] sm:$0xf]
    %v750 = vld [vmem:[%s5 + $0x14] sm:$0xf]
    %v751 = vld [vmem:[%s5 + $0x18] sm:$0xf]
    %v752 = vld [vmem:[%s5 + $0x1c] sm:$0xf]
    %v753 = vld [vmem:[%s5 + $0x20] sm:$0xf]
    %v754 = vld [vmem:[%s5 + $0x24] sm:$0xf]
    %v755 = vld [vmem:[%s5 + $0x28] sm:$0xf]
    %v756 = vld [vmem:[%s5 + $0x2c] sm:$0xf]
    %v757 = vld [vmem:[%s5 + $0x30] sm:$0xf]
    %v758 = vld [vmem:[%s5 + $0x34] sm:$0xf]
    %v759 = vld [vmem:[%s5 + $0x38] sm:$0xf]
    %v760 = vld [vmem:[%s5 + $0x3c] sm:$0xf]
    %v761 = vld [vmem:[%s5 + $0x40] sm:$0xf]
    %v762 = vld [vmem:[%s5 + $0x44] sm:$0xf]
    %v763 = vld [vmem:[%s5 + $0x48] sm:$0xf]
    %v764 = vld [vmem:[%s5 + $0x4c] sm:$0xf]
    %v765 = vld [vmem:[%s5 + $0x50] sm:$0xf]
    %v766 = vld [vmem:[%s5 + $0x54] sm:$0xf]
    %v767 = vld [vmem:[%s5 + $0x58] sm:$0xf]
    %v768 = vld [vmem:[%s5 + $0x5c] sm:$0xf]
    %v769 = vld [vmem:[%s7] sm:$0x1]
    %v771 = vlaneseq
    %v772 = vshrl.u32 %v771, 7
    %v773 = vsub.s32 0, %v772
    %v774 = vrot.slane %v769, %v773
    %v776 = vpack.c.b16 %v731, %v729
    %v777 = vpack.c.b16 %v732, %v730
    %v778 = vpack.c.b16 %v735, %v733
    %v779 = vpack.c.b16 %v736, %v734
    %v780 = vpack.c.b16 %v739, %v737
    %v781 = vpack.c.b16 %v740, %v738
    %v782 = vpack.c.b16 %v743, %v741
    %v783 = vpack.c.b16 %v744, %v742
    %v812 = vunpack.c.l.b16 %v745
    %v813 = vunpack.c.l.b16 %v746
    %v814 = vunpack.c.l.b16 %v747
    %v815 = vunpack.c.l.b16 %v748
    %v816 = vunpack.c.l.b16 %v749
    %v817 = vunpack.c.l.b16 %v750
    %v818 = vunpack.c.l.b16 %v751
    %v819 = vunpack.c.l.b16 %v752
    %v820 = vunpack.c.l.b16 %v753
    %v821 = vunpack.c.l.b16 %v754
    %v822 = vunpack.c.l.b16 %v755
    %v823 = vunpack.c.l.b16 %v756
    %v824 = vunpack.c.l.b16 %v757
    %v825 = vunpack.c.l.b16 %v758
    %v826 = vunpack.c.l.b16 %v759
    %v827 = vunpack.c.l.b16 %v760
    %v828 = vunpack.c.l.b16 %v761
    %v829 = vunpack.c.l.b16 %v762
    %v830 = vunpack.c.l.b16 %v763
    %v831 = vunpack.c.l.b16 %v764
    %v832 = vunpack.c.l.b16 %v765
    %v833 = vunpack.c.l.b16 %v766
    %v834 = vunpack.c.l.b16 %v767
    %v835 = vunpack.c.l.b16 %v768
    %v836 = vpack.c.b16 %v813, %v812
    %v837 = vpack.c.b16 %v815, %v814
    %v838 = vpack.c.b16 %v817, %v816
    %v839 = vpack.c.b16 %v819, %v818
    %v840 = vpack.c.b16 %v821, %v820
    %v841 = vpack.c.b16 %v823, %v822
    %v842 = vpack.c.b16 %v825, %v824
    %v843 = vpack.c.b16 %v827, %v826
    %v844 = vpack.c.b16 %v829, %v828
    %v845 = vpack.c.b16 %v831, %v830
    %v846 = vpack.c.b16 %v833, %v832
    %v847 = vpack.c.b16 %v835, %v834
    %v861 = vsel %vm663, %v777, 0
    %v864 = vsel %vm663, %v779, 0
    %v867 = vsel %vm663, %v781, 0
    %v870 = vsel %vm663, %v783, 0
    %872 = vmatprep.subr.bf16.mxu0 0
    %873 = vmatpush1.bf16.msra.mxu0 %v836
    %874 = vmatprep.subr.bf16.mxu0 0
    %875 = vmatpush1.bf16.msra.mxu0 %v837
    %876 = vmatprep.subr.bf16.mxu0 0
    %877 = vmatpush1.bf16.msra.mxu0 %v838
    %878 = vmatprep.subr.bf16.mxu0 0
    %879 = vmatpush1.bf16.msra.mxu0 %v839
    %880 = vmatprep.subr.bf16.mxu0 0
    %881 = vmatpush1.bf16.msra.mxu0 %v840
    %882 = vmatprep.subr.bf16.mxu0 0
    %883 = vmatpush1.bf16.msra.mxu0 %v841
    %884 = vmatprep.subr.bf16.mxu0 0
    %885 = vmatpush1.bf16.msra.mxu0 %v842
    %886 = vmatprep.subr.bf16.mxu0 0
    %887 = vmatpush1.bf16.msra.mxu0 %v843
    %888 = vmatprep.subr.bf16.mxu0 0
    %889 = vmatpush1.bf16.msra.mxu0 %v844
    %890 = vmatprep.subr.bf16.mxu0 0
    %891 = vmatpush1.bf16.msra.mxu0 %v845
    %892 = vmatprep.subr.bf16.mxu0 0
    %893 = vmatpush1.bf16.msra.mxu0 %v846
    %894 = vmatprep.subr.bf16.mxu0 0
    %895 = vmatpush1.bf16.msra.mxu0 %v847
    %896 = vmatprep.subr.bf16.mxu0 0
    %897 = vmatpush1.bf16.msra.mxu0 0
    %898 = vmatprep.subr.bf16.mxu0 0
    %899 = vmatpush1.bf16.msra.mxu0 0
    %900 = vmatprep.subr.bf16.mxu0 0
    %901 = vmatpush1.bf16.msra.mxu0 0
    %902 = vmatprep.subr.bf16.mxu0 0
    %903 = vmatpush1.bf16.msra.mxu0 0
    %904 = vmatprep.mubr.bf16.mxu0 %v861
    %905 = vmatmul.mubr.bf16.gmra.mrb[0].mxu0 %v776
    %v906 = vpop.f32.mrb[0].mxu0
    %v907 = vadd.f32 %v774, %v906
    %v908 = vpop.f32.mrb[0].mxu0
    %v909 = vpop.f32.mrb[0].mxu0
    %v910 = vadd.f32 %v774, %v909
    %v911 = vpop.f32.mrb[0].mxu0
    %912 = vmatprep.mubr.bf16.mxu0 %v864
    %913 = vmatmul.mubr.bf16.gmra.mrb[0].mxu0 %v778
    %v914 = vpop.f32.mrb[0].mxu0
    %v915 = vadd.f32 %v774, %v914
    %v916 = vpop.f32.mrb[0].mxu0
    %v917 = vpop.f32.mrb[0].mxu0
    %v918 = vadd.f32 %v774, %v917
    %v919 = vpop.f32.mrb[0].mxu0
    %920 = vmatprep.mubr.bf16.mxu0 %v867
    %921 = vmatmul.mubr.bf16.gmra.mrb[0].mxu0 %v780
    %v922 = vpop.f32.mrb[0].mxu0
    %v923 = vadd.f32 %v774, %v922
    %v924 = vpop.f32.mrb[0].mxu0
    %v925 = vpop.f32.mrb[0].mxu0
    %v926 = vadd.f32 %v774, %v925
    %v927 = vpop.f32.mrb[0].mxu0
    %928 = vmatprep.mubr.bf16.mxu0 %v870
    %929 = vmatmul.mubr.bf16.gmra.mrb[0].mxu0 %v782
    %v930 = vpop.f32.mrb[0].mxu0
    %v931 = vadd.f32 %v774, %v930
    %v932 = vpop.f32.mrb[0].mxu0
    %v933 = vpop.f32.mrb[0].mxu0
    %v934 = vadd.f32 %v774, %v933
    %v935 = vpop.f32.mrb[0].mxu0
    %936 = vdwg.mxu0
    %v937 = vmax.f32 %v907, 0.0
    %v938 = vmax.f32 %v910, 0.0
    %v939 = vmax.f32 %v915, 0.0
    %v940 = vmax.f32 %v918, 0.0
    %v941 = vmax.f32 %v923, 0.0
    %v942 = vmax.f32 %v926, 0.0
    %v943 = vmax.f32 %v931, 0.0
    %v944 = vmax.f32 %v934, 0.0
    %v945 = vlaneseq
    %v946 = vshrl.u32 %v945, 7
    %vm947 = vcmp.lt.s32.totalorder %v946, 7
    %v948 = vsel %vm947, %v937, 0.0
    %v949 = vsel %vm947, %v938, 0.0
    %v950 = vsel %vm947, %v939, 0.0
    %v951 = vsel %vm947, %v940, 0.0
    %v952 = vsel %vm947, %v941, 0.0
    %v953 = vsel %vm947, %v942, 0.0
    %v954 = vsel %vm947, %v943, 0.0
    %v955 = vsel %vm947, %v944, 0.0
    %v956 = vsel %vm638, %v948, -inf
    %v957 = vrot.slane %v956, 4
    %v958 = vmax.f32 %v956, %v957
    %v959 = vrot.slane %v958, 2
    %v960 = vmax.f32 %v958, %v959
    %v961 = vrot.slane %v960, 1
    %v962 = vmax.f32 %v960, %v961
    %v963 = vsel %vm638, %v949, -inf
    %v964 = vrot.slane %v963, 4
    %v965 = vmax.f32 %v963, %v964
    %v966 = vrot.slane %v965, 2
    %v967 = vmax.f32 %v965, %v966
    %v968 = vrot.slane %v967, 1
    %v969 = vmax.f32 %v967, %v968
    %v970 = vsel %vm638, %v950, -inf
    %v971 = vrot.slane %v970, 4
    %v972 = vmax.f32 %v970, %v971
    %v973 = vrot.slane %v972, 2
    %v974 = vmax.f32 %v972, %v973
    %v975 = vrot.slane %v974, 1
    %v976 = vmax.f32 %v974, %v975
    %v977 = vsel %vm638, %v951, -inf
    %v978 = vrot.slane %v977, 4
    %v979 = vmax.f32 %v977, %v978
    %v980 = vrot.slane %v979, 2
    %v981 = vmax.f32 %v979, %v980
    %v982 = vrot.slane %v981, 1
    %v983 = vmax.f32 %v981, %v982
    %v984 = vsel %vm638, %v952, -inf
    %v985 = vrot.slane %v984, 4
    %v986 = vmax.f32 %v984, %v985
    %v987 = vrot.slane %v986, 2
    %v988 = vmax.f32 %v986, %v987
    %v989 = vrot.slane %v988, 1
    %v990 = vmax.f32 %v988, %v989
    %v991 = vsel %vm638, %v953, -inf
    %v992 = vrot.slane %v991, 4
    %v993 = vmax.f32 %v991, %v992
    %v994 = vrot.slane %v993, 2
    %v995 = vmax.f32 %v993, %v994
    %v996 = vrot.slane %v995, 1
    %v997 = vmax.f32 %v995, %v996
    %v998 = vsel %vm638, %v954, -inf
    %v999 = vrot.slane %v998, 4
    %v1000 = vmax.f32 %v998, %v999
    %v1001 = vrot.slane %v1000, 2
    %v1002 = vmax.f32 %v1000, %v1001
    %v1003 = vrot.slane %v1002, 1
    %v1004 = vmax.f32 %v1002, %v1003
    %v1005 = vsel %vm638, %v955, -inf
    %v1006 = vrot.slane %v1005, 4
    %v1007 = vmax.f32 %v1005, %v1006
    %v1008 = vrot.slane %v1007, 2
    %v1009 = vmax.f32 %v1007, %v1008
    %v1010 = vrot.slane %v1009, 1
    %v1011 = vmax.f32 %v1009, %v1010
    %v1012 = vrot.slane %v406, 1
    %v1013 = vrot.slane %v407, 1
    %v1014 = vrot.slane %v408, 1
    %v1015 = vrot.slane %v409, 1
    %v1016 = vrot.slane %v410, 1
    %v1017 = vrot.slane %v411, 1
    %v1018 = vrot.slane %v412, 1
    %v1019 = vrot.slane %v413, 1
    %1020 = vrot.lane.b32.xlu0 %v1012, 64
    %v1021 = vpop.permute.xlu0 %1020
    %1022 = vrot.lane.b32.xlu0 %v1013, 64
    %v1023 = vpop.permute.xlu0 %1022
    %1024 = vrot.lane.b32.xlu0 %v1014, 64
    %v1025 = vpop.permute.xlu0 %1024
    %1026 = vrot.lane.b32.xlu0 %v1015, 64
    %v1027 = vpop.permute.xlu0 %1026
    %1028 = vrot.lane.b32.xlu0 %v1016, 64
    %v1029 = vpop.permute.xlu0 %1028
    %1030 = vrot.lane.b32.xlu0 %v1017, 64
    %v1031 = vpop.permute.xlu0 %1030
    %1032 = vrot.lane.b32.xlu0 %v1018, 64
    %v1033 = vpop.permute.xlu0 %1032
    %1034 = vrot.lane.b32.xlu0 %v1019, 64
    %v1035 = vpop.permute.xlu0 %1034
    %1036 = vrot.lane.b32.xlu0 %v206, 96
    %v1037 = vpop.permute.xlu0 %1036
    %1038 = vrot.lane.b32.xlu0 %v208, 96
    %v1039 = vpop.permute.xlu0 %1038
    %1040 = vrot.lane.b32.xlu0 %v210, 96
    %v1041 = vpop.permute.xlu0 %1040
    %1042 = vrot.lane.b32.xlu0 %v212, 96
    %v1043 = vpop.permute.xlu0 %1042
    %1044 = vrot.lane.b32.xlu0 %v214, 96
    %v1045 = vpop.permute.xlu0 %1044
    %1046 = vrot.lane.b32.xlu0 %v216, 96
    %v1047 = vpop.permute.xlu0 %1046
    %1048 = vrot.lane.b32.xlu0 %v218, 96
    %v1049 = vpop.permute.xlu0 %1048
    %1050 = vrot.lane.b32.xlu0 %v220, 96
    %v1051 = vpop.permute.xlu0 %1050
    %v1052 = vrot.slane %v206, 1
    %v1053 = vrot.slane %v208, 1
    %v1054 = vrot.slane %v210, 1
    %v1055 = vrot.slane %v212, 1
    %v1056 = vrot.slane %v214, 1
    %v1057 = vrot.slane %v216, 1
    %v1058 = vrot.slane %v218, 1
    %v1059 = vrot.slane %v220, 1
    %1060 = vrot.lane.b32.xlu0 %v1052, 32
    %v1061 = vpop.permute.xlu0 %1060
    %1062 = vrot.lane.b32.xlu0 %v1053, 32
    %v1063 = vpop.permute.xlu0 %1062
    %1064 = vrot.lane.b32.xlu0 %v1054, 32
    %v1065 = vpop.permute.xlu0 %1064
    %1066 = vrot.lane.b32.xlu0 %v1055, 32
    %v1067 = vpop.permute.xlu0 %1066
    %1068 = vrot.lane.b32.xlu0 %v1056, 32
    %v1069 = vpop.permute.xlu0 %1068
    %1070 = vrot.lane.b32.xlu0 %v1057, 32
    %v1071 = vpop.permute.xlu0 %1070
    %1072 = vrot.lane.b32.xlu0 %v1058, 32
    %v1073 = vpop.permute.xlu0 %1072
    %1074 = vrot.lane.b32.xlu0 %v1059, 32
    %v1075 = vpop.permute.xlu0 %1074
    %1084 = vrot.lane.b32.xlu0 %v359, 64
    %v1085 = vpop.permute.xlu0 %1084
    %1086 = vrot.lane.b32.xlu0 %v361, 64
    %v1087 = vpop.permute.xlu0 %1086
    %1088 = vrot.lane.b32.xlu0 %v363, 64
    %v1089 = vpop.permute.xlu0 %1088
    %1090 = vrot.lane.b32.xlu0 %v365, 64
    %v1091 = vpop.permute.xlu0 %1090
    %1092 = vrot.lane.b32.xlu0 %v367, 64
    %v1093 = vpop.permute.xlu0 %1092
    %1094 = vrot.lane.b32.xlu0 %v369, 64
    %v1095 = vpop.permute.xlu0 %1094
    %1096 = vrot.lane.b32.xlu0 %v371, 64
    %v1097 = vpop.permute.xlu0 %1096
    %1098 = vrot.lane.b32.xlu0 %v373, 64
    %v1099 = vpop.permute.xlu0 %1098
    %1100 = vrot.lane.b32.xlu0 %v579, 96
    %v1101 = vpop.permute.xlu0 %1100
    %1102 = vrot.lane.b32.xlu0 %v585, 96
    %v1103 = vpop.permute.xlu0 %1102
    %1104 = vrot.lane.b32.xlu0 %v591, 96
    %v1105 = vpop.permute.xlu0 %1104
    %1106 = vrot.lane.b32.xlu0 %v597, 96
    %v1107 = vpop.permute.xlu0 %1106
    %1108 = vrot.lane.b32.xlu0 %v603, 96
    %v1109 = vpop.permute.xlu0 %1108
    %1110 = vrot.lane.b32.xlu0 %v609, 96
    %v1111 = vpop.permute.xlu0 %1110
    %1112 = vrot.lane.b32.xlu0 %v615, 96
    %v1113 = vpop.permute.xlu0 %1112
    %1114 = vrot.lane.b32.xlu0 %v621, 96
    %v1115 = vpop.permute.xlu0 %1114
    %v1116 = vrot.slane %v359, 1
    %v1117 = vrot.slane %v361, 1
    %v1118 = vrot.slane %v363, 1
    %v1119 = vrot.slane %v365, 1
    %v1120 = vrot.slane %v367, 1
    %v1121 = vrot.slane %v369, 1
    %v1122 = vrot.slane %v371, 1
    %v1123 = vrot.slane %v373, 1
    %v1125 = vsel %vm663, %v641, %v1021
    %v1127 = vsel %vm663, %v644, %v1023
    %v1129 = vsel %vm663, %v647, %v1025
    %v1131 = vsel %vm663, %v650, %v1027
    %v1133 = vsel %vm663, %v653, %v1029
    %v1135 = vsel %vm663, %v656, %v1031
    %v1137 = vsel %vm663, %v659, %v1033
    %v1139 = vsel %vm663, %v662, %v1035
    %v1141 = vsel %vm680, %v1125, %v1037
    %v1143 = vsel %vm680, %v1127, %v1039
    %v1145 = vsel %vm680, %v1129, %v1041
    %v1147 = vsel %vm680, %v1131, %v1043
    %v1149 = vsel %vm680, %v1133, %v1045
    %v1151 = vsel %vm680, %v1135, %v1047
    %v1153 = vsel %vm680, %v1137, %v1049
    %v1155 = vsel %vm680, %v1139, %v1051
    %v1158 = vsel %vm638, %v515, %v1061
    %v1161 = vsel %vm638, %v521, %v1063
    %v1164 = vsel %vm638, %v527, %v1065
    %v1167 = vsel %vm638, %v533, %v1067
    %v1170 = vsel %vm638, %v539, %v1069
    %v1173 = vsel %vm638, %v545, %v1071
    %v1176 = vsel %vm638, %v551, %v1073
    %v1179 = vsel %vm638, %v557, %v1075
    %v1181 = vsel %vm663, %v1158, %v1085
    %v1183 = vsel %vm663, %v1161, %v1087
    %v1185 = vsel %vm663, %v1164, %v1089
    %v1187 = vsel %vm663, %v1167, %v1091
    %v1189 = vsel %vm663, %v1170, %v1093
    %v1191 = vsel %vm663, %v1173, %v1095
    %v1193 = vsel %vm663, %v1176, %v1097
    %v1195 = vsel %vm663, %v1179, %v1099
    %v1197 = vsel %vm680, %v1181, %v1101
    %v1199 = vsel %vm680, %v1183, %v1103
    %v1201 = vsel %vm680, %v1185, %v1105
    %v1203 = vsel %vm680, %v1187, %v1107
    %v1205 = vsel %vm680, %v1189, %v1109
    %v1207 = vsel %vm680, %v1191, %v1111
    %v1209 = vsel %vm680, %v1193, %v1113
    %v1211 = vsel %vm680, %v1195, %v1115
    %v1228 = vunpack.c.l.b16 %v1141
    %v1229 = vunpack.c.l.b16 %v1197
    %v1230 = vunpack.c.l.b16 %v1116
    %v1231 = vunpack.c.l.b16 %v1143
    %v1232 = vunpack.c.l.b16 %v1199
    %v1233 = vunpack.c.l.b16 %v1117
    %v1234 = vunpack.c.l.b16 %v1145
    %v1235 = vunpack.c.l.b16 %v1201
    %v1236 = vunpack.c.l.b16 %v1118
    %v1237 = vunpack.c.l.b16 %v1147
    %v1238 = vunpack.c.l.b16 %v1203
    %v1239 = vunpack.c.l.b16 %v1119
    %v1240 = vunpack.c.l.b16 %v1149
    %v1241 = vunpack.c.l.b16 %v1205
    %v1242 = vunpack.c.l.b16 %v1120
    %v1243 = vunpack.c.l.b16 %v1151
    %v1244 = vunpack.c.l.b16 %v1207
    %v1245 = vunpack.c.l.b16 %v1121
    %v1246 = vunpack.c.l.b16 %v1153
    %v1247 = vunpack.c.l.b16 %v1209
    %v1248 = vunpack.c.l.b16 %v1122
    %v1249 = vunpack.c.l.b16 %v1155
    %v1250 = vunpack.c.l.b16 %v1211
    %v1251 = vunpack.c.l.b16 %v1123
    %v1252 = vld [vmem:[%s6] sm:$0xf]
    %v1253 = vld [vmem:[%s6 + $0x4] sm:$0xf]
    %v1254 = vld [vmem:[%s6 + $0x8] sm:$0xf]
    %v1255 = vld [vmem:[%s6 + $0xc] sm:$0xf]
    %v1256 = vld [vmem:[%s6 + $0x10] sm:$0xf]
    %v1257 = vld [vmem:[%s6 + $0x14] sm:$0xf]
    %v1258 = vld [vmem:[%s6 + $0x18] sm:$0xf]
    %v1259 = vld [vmem:[%s6 + $0x1c] sm:$0xf]
    %v1260 = vld [vmem:[%s6 + $0x20] sm:$0xf]
    %v1261 = vld [vmem:[%s6 + $0x24] sm:$0xf]
    %v1262 = vld [vmem:[%s6 + $0x28] sm:$0xf]
    %v1263 = vld [vmem:[%s6 + $0x2c] sm:$0xf]
    %v1264 = vld [vmem:[%s6 + $0x30] sm:$0xf]
    %v1265 = vld [vmem:[%s6 + $0x34] sm:$0xf]
    %v1266 = vld [vmem:[%s6 + $0x38] sm:$0xf]
    %v1267 = vld [vmem:[%s6 + $0x3c] sm:$0xf]
    %v1268 = vld [vmem:[%s6 + $0x40] sm:$0xf]
    %v1269 = vld [vmem:[%s6 + $0x44] sm:$0xf]
    %v1270 = vld [vmem:[%s6 + $0x48] sm:$0xf]
    %v1271 = vld [vmem:[%s6 + $0x4c] sm:$0xf]
    %v1272 = vld [vmem:[%s6 + $0x50] sm:$0xf]
    %v1273 = vld [vmem:[%s6 + $0x54] sm:$0xf]
    %v1274 = vld [vmem:[%s6 + $0x58] sm:$0xf]
    %v1275 = vld [vmem:[%s6 + $0x5c] sm:$0xf]
    %v1276 = vld [vmem:[%s6 + $0x60] sm:$0xf]
    %v1277 = vld [vmem:[%s6 + $0x64] sm:$0xf]
    %v1278 = vld [vmem:[%s6 + $0x68] sm:$0xf]
    %v1279 = vld [vmem:[%s6 + $0x6c] sm:$0xf]
    %v1280 = vld [vmem:[%s6 + $0x70] sm:$0xf]
    %v1281 = vld [vmem:[%s6 + $0x74] sm:$0xf]
    %v1282 = vld [vmem:[%s6 + $0x78] sm:$0xf]
    %v1283 = vld [vmem:[%s6 + $0x7c] sm:$0xf]
    %v1284 = vld [vmem:[%s6 + $0x80] sm:$0xf]
    %v1285 = vld [vmem:[%s6 + $0x84] sm:$0xf]
    %v1286 = vld [vmem:[%s6 + $0x88] sm:$0xf]
    %v1287 = vld [vmem:[%s6 + $0x8c] sm:$0xf]
    %v1288 = vld [vmem:[%s8] sm:$0x1]
    %v1290 = vlaneseq
    %v1291 = vshrl.u32 %v1290, 7
    %v1292 = vsub.s32 0, %v1291
    %v1293 = vrot.slane %v1288, %v1292
    %v1295 = vpack.c.b16 %v1231, %v1228
    %v1296 = vpack.c.b16 %v1232, %v1229
    %v1297 = vpack.c.b16 %v1233, %v1230
    %v1298 = vpack.c.b16 %v1237, %v1234
    %v1299 = vpack.c.b16 %v1238, %v1235
    %v1300 = vpack.c.b16 %v1239, %v1236
    %v1301 = vpack.c.b16 %v1243, %v1240
    %v1302 = vpack.c.b16 %v1244, %v1241
    %v1303 = vpack.c.b16 %v1245, %v1242
    %v1304 = vpack.c.b16 %v1249, %v1246
    %v1305 = vpack.c.b16 %v1250, %v1247
    %v1306 = vpack.c.b16 %v1251, %v1248
    %v1351 = vunpack.c.l.b16 %v1252
    %v1352 = vunpack.c.l.b16 %v1253
    %v1353 = vunpack.c.l.b16 %v1254
    %v1354 = vunpack.c.l.b16 %v1255
    %v1355 = vunpack.c.l.b16 %v1256
    %v1356 = vunpack.c.l.b16 %v1257
    %v1357 = vunpack.c.l.b16 %v1258
    %v1358 = vunpack.c.l.b16 %v1259
    %v1359 = vunpack.c.l.b16 %v1260
    %v1360 = vunpack.c.l.b16 %v1261
    %v1361 = vunpack.c.l.b16 %v1262
    %v1362 = vunpack.c.l.b16 %v1263
    %v1363 = vunpack.c.l.b16 %v1264
    %v1364 = vunpack.c.l.b16 %v1265
    %v1365 = vunpack.c.l.b16 %v1266
    %v1366 = vunpack.c.l.b16 %v1267
    %v1367 = vunpack.c.l.b16 %v1268
    %v1368 = vunpack.c.l.b16 %v1269
    %v1369 = vunpack.c.l.b16 %v1270
    %v1370 = vunpack.c.l.b16 %v1271
    %v1371 = vunpack.c.l.b16 %v1272
    %v1372 = vunpack.c.l.b16 %v1273
    %v1373 = vunpack.c.l.b16 %v1274
    %v1374 = vunpack.c.l.b16 %v1275
    %v1375 = vunpack.c.l.b16 %v1276
    %v1376 = vunpack.c.l.b16 %v1277
    %v1377 = vunpack.c.l.b16 %v1278
    %v1378 = vunpack.c.l.b16 %v1279
    %v1379 = vunpack.c.l.b16 %v1280
    %v1380 = vunpack.c.l.b16 %v1281
    %v1381 = vunpack.c.l.b16 %v1282
    %v1382 = vunpack.c.l.b16 %v1283
    %v1383 = vunpack.c.l.b16 %v1284
    %v1384 = vunpack.c.l.b16 %v1285
    %v1385 = vunpack.c.l.b16 %v1286
    %v1386 = vunpack.c.l.b16 %v1287
    %v1387 = vpack.c.b16 %v1352, %v1351
    %v1388 = vpack.c.b16 %v1354, %v1353
    %v1389 = vpack.c.b16 %v1356, %v1355
    %v1390 = vpack.c.b16 %v1358, %v1357
    %v1391 = vpack.c.b16 %v1360, %v1359
    %v1392 = vpack.c.b16 %v1362, %v1361
    %v1393 = vpack.c.b16 %v1364, %v1363
    %v1394 = vpack.c.b16 %v1366, %v1365
    %v1395 = vpack.c.b16 %v1368, %v1367
    %v1396 = vpack.c.b16 %v1370, %v1369
    %v1397 = vpack.c.b16 %v1372, %v1371
    %v1398 = vpack.c.b16 %v1374, %v1373
    %v1399 = vpack.c.b16 %v1376, %v1375
    %v1400 = vpack.c.b16 %v1378, %v1377
    %v1401 = vpack.c.b16 %v1380, %v1379
    %v1402 = vpack.c.b16 %v1382, %v1381
    %v1403 = vpack.c.b16 %v1384, %v1383
    %v1404 = vpack.c.b16 %v1386, %v1385
    %v1424 = vsel %vm638, %v1297, 0
    %v1427 = vsel %vm638, %v1300, 0
    %v1430 = vsel %vm638, %v1303, 0
    %v1433 = vsel %vm638, %v1306, 0
    %1435 = vmatprep.subr.bf16.mxu0 0
    %1436 = vmatpush1.bf16.msra.mxu0 %v1387
    %1437 = vmatprep.subr.bf16.mxu0 0
    %1438 = vmatpush1.bf16.msra.mxu0 %v1388
    %1439 = vmatprep.subr.bf16.mxu0 0
    %1440 = vmatpush1.bf16.msra.mxu0 %v1389
    %1441 = vmatprep.subr.bf16.mxu0 0
    %1442 = vmatpush1.bf16.msra.mxu0 %v1390
    %1443 = vmatprep.subr.bf16.mxu0 0
    %1444 = vmatpush1.bf16.msra.mxu0 %v1391
    %1445 = vmatprep.subr.bf16.mxu0 0
    %1446 = vmatpush1.bf16.msra.mxu0 %v1392
    %1447 = vmatprep.subr.bf16.mxu0 0
    %1448 = vmatpush1.bf16.msra.mxu0 %v1393
    %1449 = vmatprep.subr.bf16.mxu0 0
    %1450 = vmatpush1.bf16.msra.mxu0 %v1394
    %1451 = vmatprep.subr.bf16.mxu0 0
    %1452 = vmatpush1.bf16.msra.mxu0 %v1395
    %1453 = vmatprep.subr.bf16.mxu0 0
    %1454 = vmatpush1.bf16.msra.mxu0 %v1396
    %1455 = vmatprep.subr.bf16.mxu0 0
    %1456 = vmatpush1.bf16.msra.mxu0 %v1397
    %1457 = vmatprep.subr.bf16.mxu0 0
    %1458 = vmatpush1.bf16.msra.mxu0 %v1398
    %1459 = vmatprep.subr.bf16.mxu0 0
    %1460 = vmatpush1.bf16.msra.mxu0 %v1399
    %1461 = vmatprep.subr.bf16.mxu0 0
    %1462 = vmatpush1.bf16.msra.mxu0 %v1400
    %1463 = vmatprep.subr.bf16.mxu0 0
    %1464 = vmatpush1.bf16.msra.mxu0 %v1401
    %1465 = vmatprep.subr.bf16.mxu0 0
    %1466 = vmatpush1.bf16.msra.mxu0 %v1402
    %1467 = vmatprep.mubr.bf16.mxu0 %v1296
    %1468 = vmatmul.mubr.bf16.gmra.mrb[0].mxu0 %v1295
    %v1469 = vpop.f32.mrb[0].mxu0
    %v1470 = vadd.f32 %v1293, %v1469
    %v1471 = vpop.f32.mrb[0].mxu0
    %v1472 = vpop.f32.mrb[0].mxu0
    %v1473 = vadd.f32 %v1293, %v1472
    %v1474 = vpop.f32.mrb[0].mxu0
    %1475 = vmatprep.mubr.bf16.mxu0 %v1299
    %1476 = vmatmul.mubr.bf16.gmra.mrb[0].mxu0 %v1298
    %v1477 = vpop.f32.mrb[0].mxu0
    %v1478 = vadd.f32 %v1293, %v1477
    %v1479 = vpop.f32.mrb[0].mxu0
    %v1480 = vpop.f32.mrb[0].mxu0
    %v1481 = vadd.f32 %v1293, %v1480
    %v1482 = vpop.f32.mrb[0].mxu0
    %1483 = vmatprep.mubr.bf16.mxu0 %v1302
    %1484 = vmatmul.mubr.bf16.gmra.mrb[0].mxu0 %v1301
    %v1485 = vpop.f32.mrb[0].mxu0
    %v1486 = vadd.f32 %v1293, %v1485
    %v1487 = vpop.f32.mrb[0].mxu0
    %v1488 = vpop.f32.mrb[0].mxu0
    %v1489 = vadd.f32 %v1293, %v1488
    %v1490 = vpop.f32.mrb[0].mxu0
    %1491 = vmatprep.mubr.bf16.mxu0 %v1305
    %1492 = vmatmul.mubr.bf16.gmra.mrb[0].mxu0 %v1304
    %v1493 = vpop.f32.mrb[0].mxu0
    %v1494 = vadd.f32 %v1293, %v1493
    %v1495 = vpop.f32.mrb[0].mxu0
    %v1496 = vpop.f32.mrb[0].mxu0
    %v1497 = vadd.f32 %v1293, %v1496
    %v1498 = vpop.f32.mrb[0].mxu0
    %1499 = vdwg.mxu0
    %1500 = vmatprep.subr.bf16.mxu0 0
    %1501 = vmatpush1.bf16.msra.mxu0 %v1403
    %1502 = vmatprep.subr.bf16.mxu0 0
    %1503 = vmatpush1.bf16.msra.mxu0 %v1404
    %1504 = vmatprep.subr.bf16.mxu0 0
    %1505 = vmatpush1.bf16.msra.mxu0 0
    %1506 = vmatprep.subr.bf16.mxu0 0
    %1507 = vmatpush1.bf16.msra.mxu0 0
    %1508 = vmatprep.subr.bf16.mxu0 0
    %1509 = vmatpush1.bf16.msra.mxu0 0
    %1510 = vmatprep.subr.bf16.mxu0 0
    %1511 = vmatpush1.bf16.msra.mxu0 0
    %1512 = vmatprep.subr.bf16.mxu0 0
    %1513 = vmatpush1.bf16.msra.mxu0 0
    %1514 = vmatprep.subr.bf16.mxu0 0
    %1515 = vmatpush1.bf16.msra.mxu0 0
    %1516 = vmatprep.subr.bf16.mxu0 0
    %1517 = vmatpush1.bf16.msra.mxu0 0
    %1518 = vmatprep.subr.bf16.mxu0 0
    %1519 = vmatpush1.bf16.msra.mxu0 0
    %1520 = vmatprep.subr.bf16.mxu0 0
    %1521 = vmatpush1.bf16.msra.mxu0 0
    %1522 = vmatprep.subr.bf16.mxu0 0
    %1523 = vmatpush1.bf16.msra.mxu0 0
    %1524 = vmatprep.subr.bf16.mxu0 0
    %1525 = vmatpush1.bf16.msra.mxu0 0
    %1526 = vmatprep.subr.bf16.mxu0 0
    %1527 = vmatpush1.bf16.msra.mxu0 0
    %1528 = vmatprep.subr.bf16.mxu0 0
    %1529 = vmatpush1.bf16.msra.mxu0 0
    %1530 = vmatprep.subr.bf16.mxu0 0
    %1531 = vmatpush1.bf16.msra.mxu0 0
    %1532 = vmatprep.mubr.bf16.mxu0 0
    %1533 = vmatmul.mubr.bf16.gmra.mrb[0].mxu0 %v1424
    %v1534 = vpop.f32.mrb[0].mxu0
    %v1535 = vadd.f32 %v1470, %v1534
    %v1536 = vpop.f32.mrb[0].mxu0
    %v1537 = vpop.f32.mrb[0].mxu0
    %v1538 = vadd.f32 %v1473, %v1537
    %v1539 = vpop.f32.mrb[0].mxu0
    %1540 = vmatprep.mubr.bf16.mxu0 0
    %1541 = vmatmul.mubr.bf16.gmra.mrb[0].mxu0 %v1427
    %v1542 = vpop.f32.mrb[0].mxu0
    %v1543 = vadd.f32 %v1478, %v1542
    %v1544 = vpop.f32.mrb[0].mxu0
    %v1545 = vpop.f32.mrb[0].mxu0
    %v1546 = vadd.f32 %v1481, %v1545
    %v1547 = vpop.f32.mrb[0].mxu0
    %1548 = vmatprep.mubr.bf16.mxu0 0
    %1549 = vmatmul.mubr.bf16.gmra.mrb[0].mxu0 %v1430
    %v1550 = vpop.f32.mrb[0].mxu0
    %v1551 = vadd.f32 %v1486, %v1550
    %v1552 = vpop.f32.mrb[0].mxu0
    %v1553 = vpop.f32.mrb[0].mxu0
    %v1554 = vadd.f32 %v1489, %v1553
    %v1555 = vpop.f32.mrb[0].mxu0
    %1556 = vmatprep.mubr.bf16.mxu0 0
    %1557 = vmatmul.mubr.bf16.gmra.mrb[0].mxu0 %v1433
    %v1558 = vpop.f32.mrb[0].mxu0
    %v1559 = vadd.f32 %v1494, %v1558
    %v1560 = vpop.f32.mrb[0].mxu0
    %v1561 = vpop.f32.mrb[0].mxu0
    %v1562 = vadd.f32 %v1497, %v1561
    %v1563 = vpop.f32.mrb[0].mxu0
    %1564 = vdwg.mxu0
    %v1565 = vmax.f32 %v1535, 0.0
    %v1566 = vmax.f32 %v1538, 0.0
    %v1567 = vmax.f32 %v1543, 0.0
    %v1568 = vmax.f32 %v1546, 0.0
    %v1569 = vmax.f32 %v1551, 0.0
    %v1570 = vmax.f32 %v1554, 0.0
    %v1571 = vmax.f32 %v1559, 0.0
    %v1572 = vmax.f32 %v1562, 0.0
    %vm1573 = vcmp.lt.s32.totalorder %v946, 6
    %v1574 = vsel %vm1573, %v1565, 0.0
    %v1575 = vsel %vm1573, %v1566, 0.0
    %v1576 = vsel %vm1573, %v1567, 0.0
    %v1577 = vsel %vm1573, %v1568, 0.0
    %v1578 = vsel %vm1573, %v1569, 0.0
    %v1579 = vsel %vm1573, %v1570, 0.0
    %v1580 = vsel %vm1573, %v1571, 0.0
    %v1581 = vsel %vm1573, %v1572, 0.0
    %v1582 = vsel %vm638, %v1574, -inf
    %v1583 = vrot.slane %v1582, 4
    %v1584 = vmax.f32 %v1582, %v1583
    %v1585 = vrot.slane %v1584, 2
    %v1586 = vmax.f32 %v1584, %v1585
    %v1587 = vrot.slane %v1586, 1
    %v1588 = vmax.f32 %v1586, %v1587
    %v1589 = vsel %vm638, %v1575, -inf
    %v1590 = vrot.slane %v1589, 4
    %v1591 = vmax.f32 %v1589, %v1590
    %v1592 = vrot.slane %v1591, 2
    %v1593 = vmax.f32 %v1591, %v1592
    %v1594 = vrot.slane %v1593, 1
    %v1595 = vmax.f32 %v1593, %v1594
    %v1596 = vsel %vm638, %v1576, -inf
    %v1597 = vrot.slane %v1596, 4
    %v1598 = vmax.f32 %v1596, %v1597
    %v1599 = vrot.slane %v1598, 2
    %v1600 = vmax.f32 %v1598, %v1599
    %v1601 = vrot.slane %v1600, 1
    %v1602 = vmax.f32 %v1600, %v1601
    %v1603 = vsel %vm638, %v1577, -inf
    %v1604 = vrot.slane %v1603, 4
    %v1605 = vmax.f32 %v1603, %v1604
    %v1606 = vrot.slane %v1605, 2
    %v1607 = vmax.f32 %v1605, %v1606
    %v1608 = vrot.slane %v1607, 1
    %v1609 = vmax.f32 %v1607, %v1608
    %v1610 = vsel %vm638, %v1578, -inf
    %v1611 = vrot.slane %v1610, 4
    %v1612 = vmax.f32 %v1610, %v1611
    %v1613 = vrot.slane %v1612, 2
    %v1614 = vmax.f32 %v1612, %v1613
    %v1615 = vrot.slane %v1614, 1
    %v1616 = vmax.f32 %v1614, %v1615
    %v1617 = vsel %vm638, %v1579, -inf
    %v1618 = vrot.slane %v1617, 4
    %v1619 = vmax.f32 %v1617, %v1618
    %v1620 = vrot.slane %v1619, 2
    %v1621 = vmax.f32 %v1619, %v1620
    %v1622 = vrot.slane %v1621, 1
    %v1623 = vmax.f32 %v1621, %v1622
    %v1624 = vsel %vm638, %v1580, -inf
    %v1625 = vrot.slane %v1624, 4
    %v1626 = vmax.f32 %v1624, %v1625
    %v1627 = vrot.slane %v1626, 2
    %v1628 = vmax.f32 %v1626, %v1627
    %v1629 = vrot.slane %v1628, 1
    %v1630 = vmax.f32 %v1628, %v1629
    %v1631 = vsel %vm638, %v1581, -inf
    %v1632 = vrot.slane %v1631, 4
    %v1633 = vmax.f32 %v1631, %v1632
    %v1634 = vrot.slane %v1633, 2
    %v1635 = vmax.f32 %v1633, %v1634
    %v1636 = vrot.slane %v1635, 1
    %v1637 = vmax.f32 %v1635, %v1636
    %vm1646 = vcmask 1041409
    %v1647 = vsel %vm1646, %v969, %v962
    %vm1648 = vcmask 1042434
    %v1649 = vsel %vm1648, %v976, %v1647
    %vm1650 = vcmask 1043459
    %v1651 = vsel %vm1650, %v983, %v1649
    %vm1652 = vcmask 1044484
    %v1653 = vsel %vm1652, %v990, %v1651
    %vm1654 = vcmask 1045509
    %v1655 = vsel %vm1654, %v997, %v1653
    %vm1656 = vcmask 1046534
    %v1657 = vsel %vm1656, %v1004, %v1655
    %vm1658 = vcmask 1047559
    %v1659 = vsel %vm1658, %v1011, %v1657
    %v1669 = vsel %vm1646, %v1595, %v1588
    %v1670 = vsel %vm1648, %v1602, %v1669
    %v1671 = vsel %vm1650, %v1609, %v1670
    %v1672 = vsel %vm1652, %v1616, %v1671
    %v1673 = vsel %vm1654, %v1623, %v1672
    %v1674 = vsel %vm1656, %v1630, %v1673
    %v1675 = vsel %vm1658, %v1637, %v1674
    %1676 = vrot.lane.b32.xlu0 %v1675, 32
    %v1677 = vpop.permute.xlu0 %1676
    %v1679 = vsel %vm638, %v1659, %v1677
    %1680 = vst.msk [vmem:[#allocation2] sm:$0xff] %vm663, %v1679
    // Predicated region
    $region38: #{tpu_custom_call.1} parent=1 // pred_check
      _
    $region39: #{tpu_custom_call.1} parent=1 // pred_check_branch
      %1682 = sbr.rel (0) target = $region41
    $region40: #{tpu_custom_call.1} parent=1 // pred_region
      %s1684 = ssub.s32 128, 128
      %1685 = vsyncadd [#allocation3], %s1684
      %s1687 = sshll.u32 [#allocation2], 4
      %s1688 = int_to_ptr.vmem [resolvable:$true] %s1687
      %1690 = dma.vmem_to_hbm [thread:$0]  %s1688, 128, %s9, [#allocation3]
    $region41: #{tpu_custom_call.1} parent=1 // pred_fallthru
      _
    // Predicated region
    $region42: #{tpu_custom_call.1} parent=1 // pred_check
      _
    $region43: #{tpu_custom_call.1} parent=1 // pred_check_branch
      %1692 = sbr.rel (0) target = $region45
    $region44: #{tpu_custom_call.1} parent=1 // pred_region
      %1693 = dma.done [#allocation3], 128
    $region45: #{tpu_custom_call.1} parent=1 // pred_fallthru
      _
    %1694 = vsyncpa [#allocation3], 1

</llo_original>
